<compile_context>
chip_gen: v7x
topology: tpu7x:2x2x1
jax: 0.10.0
libtpu: 0.0.40
codegen_flags: <defaults>
</compile_context>

<pallas_src>
import numpy as np
import jax
import jax.numpy as jnp
from jax.experimental import pallas as pl
from jax.experimental.pallas import tpu as pltpu

# ---------------- fixed module dimensions (from __init__) --------------------
EMB_DIM   = 50      # nn.Embedding(N+1, 50) (interest ids and link ids)
DOM_DIM   = 30      # nn.Embedding(N_domain+2, 30)
TEXT_IN   = 300     # fasttext sentence vectors
TEXT_HID  = 168     # Text_Emb_Model.linear1 out
TEXT_OUT  = 80      # Text_Emb_Model.linear2 out
GCN1_IN, GCN1_OUT = 130, 60      # 50 + 80
GCN2_IN, GCN2_OUT = 60, 30
PROD_IN, PROD_HID = 160, 80      # 50 + 80 + 30
HEAD_OUT  = 18
OUT_PAD   = 128     # lane-dense padded head width (sliced back to 18 outside)


# ------------------------------- Pallas kernel -------------------------------
def interest_rec_kernel(
    # node features
    iemb_ref, itext_ref, ahat_ref,          # Interest_GNN: (Ni,50), (Ni,300), (Ni,Ni) bf16
    lemb_ref, ptext_ref, demb_ref,          # Product_NN:  (Np,50), (Np,300), (Np,30)
    # shared Text_Emb_Model.linear1
    wta_ref, bta_ref,                       # (300,168), (1,168)
    # Interest_GNN weights (text linear2 fused into W1's text block)
    w1a_ref, w1t_ref, c1_ref, b1_ref,       # (50,60), (168,60), (1,60), (1,60)
    w2_ref, b2_ref,                         # (60,30), (1,30)
    w3p_ref, b3p_ref,                       # (30,128), (1,128)   zero-padded head
    # Product_NN weights (text linear2 fused into Wp1's text block)
    pwl_ref, pwt_ref, pwd_ref, pb1_ref,     # (50,80), (168,80), (30,80), (1,80)
    pw2_ref, pb2_ref,                       # (80,128), (1,128)   zero-padded head
    # outputs (lane-dense 128-wide)
    prod_out_ref,                           # (Np, 128)
    int_out_ref,                            # (Ni, 128)
):
    f32 = jnp.float32

    # Shared Text_Emb_Model.linear1 + ReLU hidden.  linear2 is folded into the
    # downstream weights, so the (N, 80) text embedding is never materialized.
    th_i = jnp.maximum(
        jnp.dot(itext_ref[...], wta_ref[...], preferred_element_type=f32) + bta_ref[...], 0.0)
    th_p = jnp.maximum(
        jnp.dot(ptext_ref[...], wta_ref[...], preferred_element_type=f32) + bta_ref[...], 0.0)

    # ------------------------------ Interest_GNN ------------------------------
    # concat(emb, text_emb) @ W1
    #   = emb @ W1[:50] + th_i @ (Wtb @ W1[50:]) + (btb @ W1[50:])
    # c1 = btb @ W1[50:] is part of X @ W1, so it is added BEFORE aggregation.
    xw1 = (jnp.dot(iemb_ref[...], w1a_ref[...], preferred_element_type=f32)
           + jnp.dot(th_i, w1t_ref[...], preferred_element_type=f32)
           + c1_ref[...])
    ahat = ahat_ref[...].astype(f32)        # bf16 storage, f32 aggregation math
    h1 = jnp.maximum(jnp.dot(ahat, xw1, preferred_element_type=f32) + b1_ref[...], 0.0)
    # TODO(synk): nn.Dropout applied as eval-mode identity; training-mode dropout
    # would use pltpu.prng_seed / pltpu.prng_random_bits.
    h1w2 = jnp.dot(h1, w2_ref[...], preferred_element_type=f32)
    h2 = jnp.maximum(jnp.dot(ahat, h1w2, preferred_element_type=f32) + b2_ref[...], 0.0)
    int_out_ref[...] = (jnp.dot(h2, w3p_ref[...], preferred_element_type=f32)
                        + b3p_ref[...])

    # ------------------------------- Product_NN -------------------------------
    # concat(link_emb, text_emb, domain_emb) @ Wp1 + bp1  (text linear2 + bias fused)
    ph = (jnp.dot(lemb_ref[...], pwl_ref[...], preferred_element_type=f32)
          + jnp.dot(th_p, pwt_ref[...], preferred_element_type=f32)
          + jnp.dot(demb_ref[...], pwd_ref[...], preferred_element_type=f32)
          + pb1_ref[...])
    ph = jnp.maximum(ph, 0.0)
    prod_out_ref[...] = (jnp.dot(ph, pw2_ref[...], preferred_element_type=f32)
                         + pb2_ref[...])


def interest_rec_forward(int_emb, int_text, a_hat, link_emb, prod_text, dom_emb, fused):
    """Runs the fused kernel; returns (product_feats, interest_feats) like the module."""
    n_i = int_emb.shape[0]
    n_p = link_emb.shape[0]
    inputs = (
        int_emb, int_text, a_hat, link_emb, prod_text, dom_emb,
        fused["wta"], fused["bta"],
        fused["w1a"], fused["w1t"], fused["c1"], fused["b1"],
        fused["w2"], fused["b2"], fused["w3p"], fused["b3p"],
        fused["pwl"], fused["pwt"], fused["pwd"], fused["pb1"],
        fused["pw2"], fused["pb2"],
    )
    vmem = pl.BlockSpec(memory_space=pltpu.MemorySpace.VMEM)
    prod_pad, int_pad = pl.pallas_call(
        interest_rec_kernel,
        out_shape=(
            jax.ShapeDtypeStruct((n_p, OUT_PAD), jnp.float32),
            jax.ShapeDtypeStruct((n_i, OUT_PAD), jnp.float32),
        ),
        in_specs=[vmem] * len(inputs),
        out_specs=(vmem, vmem),
    )(*inputs)
    # Lane-dense padded heads; the real 18-wide logits are the leading columns.
    return prod_pad[:, :HEAD_OUT], int_pad[:, :HEAD_OUT]


# --------------------------- glue: graph + params ----------------------------
def build_normalized_adjacency(num_nodes, edges):
    """Dense A_hat = D^{-1/2}(A + I)D^{-1/2} as in PyG GCNConv.gcn_norm.

    The edge list is explicitly pre-symmetrized (undirected interest graph ->
    both directions), matching GCNConv fed a symmetric edge_index.
    """
    und = set()
    for (u, v) in edges:
        und.add((int(u), int(v)))
        und.add((int(v), int(u)))
    und = sorted(und)
    src = np.array([e[0] for e in und] + list(range(num_nodes)), dtype=np.int64)
    dst = np.array([e[1] for e in und] + list(range(num_nodes)), dtype=np.int64)
    deg = np.zeros(num_nodes, dtype=np.float64)
    np.add.at(deg, dst, 1.0)                       # in-degree incl. self loop
    dinv = np.where(deg > 0, 1.0 / np.sqrt(deg), 0.0)
    a_hat = np.zeros((num_nodes, num_nodes), dtype=np.float64)
    a_hat[dst, src] = dinv[dst] * dinv[src]        # message src -> dst
    return jnp.asarray(a_hat, dtype=jnp.float32)


def init_params(key):
    def lin(k, fan_in, fan_out):
        bound = 1.0 / np.sqrt(fan_in)
        kw, kb = jax.random.split(k)
        w = jax.random.uniform(kw, (fan_in, fan_out), jnp.float32, -bound, bound)
        b = jax.random.uniform(kb, (1, fan_out), jnp.float32, -bound, bound)
        return w, b

    ks = jax.random.split(key, 7)
    wta, bta = lin(ks[0], TEXT_IN, TEXT_HID)    # Text_Emb_Model.linear1 (300,168)
    wtb, btb = lin(ks[1], TEXT_HID, TEXT_OUT)   # Text_Emb_Model.linear2 (168, 80)
    w1,  b1  = lin(ks[2], GCN1_IN, GCN1_OUT)    # GCNConv(130, 60)
    w2,  b2  = lin(ks[3], GCN2_IN, GCN2_OUT)    # GCNConv(60, 30)
    w3,  b3  = lin(ks[4], GCN2_OUT, HEAD_OUT)   # Linear(30, 18)
    wp1, bp1 = lin(ks[5], PROD_IN, PROD_HID)    # Product_NN.linear1 (160, 80)
    wp2, bp2 = lin(ks[6], PROD_HID, HEAD_OUT)   # Product_NN.linear2 (80, 18)
    return dict(wta=wta, bta=bta, wtb=wtb, btb=btb,
                w1=w1, b1=b1, w2=w2, b2=b2, w3=w3, b3=b3,
                wp1=wp1, bp1=bp1, wp2=wp2, bp2=bp2)


def fuse_params(p):
    """Algebraic fusion of Text_Emb_Model.linear2 into W1 / Wp1 + padded heads."""
    wtb, btb = p["wtb"], p["btb"]
    w1b      = p["w1"][EMB_DIM:]                           # (80, 60)  GCN1 text block
    pw1_text = p["wp1"][EMB_DIM:EMB_DIM + TEXT_OUT]        # (80, 80)  Wp1 text block
    pad = lambda a: jnp.pad(a, ((0, 0), (0, OUT_PAD - a.shape[1])))
    return {
        "wta": p["wta"], "bta": p["bta"],
        # Interest_GNN
        "w1a": p["w1"][:EMB_DIM],          # (50, 60)
        "w1t": wtb @ w1b,                  # (168, 60)
        "c1":  btb @ w1b,                  # (1, 60)  pre-aggregation constant
        "b1":  p["b1"],
        "w2":  p["w2"], "b2": p["b2"],
        "w3p": pad(p["w3"]), "b3p": pad(p["b3"]),
        # Product_NN (no aggregation -> bias term folds into bp1 directly)
        "pwl": p["wp1"][:EMB_DIM],                      # (50, 80)
        "pwt": wtb @ pw1_text,                          # (168, 80)
        "pwd": p["wp1"][EMB_DIM + TEXT_OUT:],           # (30, 80)
        "pb1": p["bp1"] + btb @ pw1_text,               # (1, 80)
        "pw2": pad(p["wp2"]), "pb2": pad(p["bp2"]),
    }


def reference_forward(int_emb, int_text, a_hat, link_emb, prod_text, dom_emb, p):
    """Pure-JAX replica of the unfused PyTorch math (eval mode)."""
    def text_emb(t):   # Linear(300,168) -> ReLU -> Linear(168,80)
        return jnp.maximum(t @ p["wta"] + p["bta"], 0.0) @ p["wtb"] + p["btb"]
    a = a_hat.astype(jnp.float32)
    # Interest_GNN
    x_i = jnp.concatenate([int_emb, text_emb(int_text)], axis=1)
    h1 = jnp.maximum(a @ (x_i @ p["w1"]) + p["b1"], 0.0)
    h2 = jnp.maximum(a @ (h1 @ p["w2"]) + p["b2"], 0.0)
    int_out = h2 @ p["w3"] + p["b3"]
    # Product_NN
    x_p = jnp.concatenate([link_emb, text_emb(prod_text), dom_emb], axis=1)
    prod_out = jnp.maximum(x_p @ p["wp1"] + p["bp1"], 0.0) @ p["wp2"] + p["bp2"]
    return prod_out, int_out


if __name__ == "__main__":
    N_INT, N_LINK, N_DOM = 16, 16, 6
    key = jax.random.PRNGKey(0)
    k1, k2, k3, k4, k5, k6 = jax.random.split(key, 6)

    # --- Interest_GNN inputs: feats = [(interest_id, phrase), ...] ---
    int_ids = jnp.arange(N_INT)
    int_emb_table = jax.random.normal(k1, (N_INT + 1, EMB_DIM), jnp.float32)
    int_emb = jnp.take(int_emb_table, int_ids, axis=0)                 # (Ni, 50)
    int_text = jax.random.normal(k2, (N_INT, TEXT_IN), jnp.float32)    # fasttext means

    # deterministic synthetic interest graph (ring + skip), undirected semantics
    edges = [(i, (i + 1) % N_INT) for i in range(N_INT)] + \
            [(i, (i + 3) % N_INT) for i in range(N_INT)]
    a_hat = build_normalized_adjacency(N_INT, edges)
    a_hat_bf16 = a_hat.astype(jnp.bfloat16)   # dominant O(N^2) buffer stored as bf16

    # --- Product_NN inputs: feats = [(link_id, text, domain_id), ...] ---
    link_ids = jnp.arange(N_LINK)
    dom_ids = jnp.asarray(np.arange(N_LINK) % N_DOM)
    link_emb_table = jax.random.normal(k3, (N_LINK + 1, EMB_DIM), jnp.float32)
    dom_emb_table = jax.random.normal(k4, (N_DOM + 2, DOM_DIM), jnp.float32)
    dom_emb_table = dom_emb_table.at[N_DOM + 1].set(0.0)   # padding_idx row
    link_emb = jnp.take(link_emb_table, link_ids, axis=0)              # (Np, 50)
    dom_emb = jnp.take(dom_emb_table, dom_ids, axis=0)                 # (Np, 30)
    prod_text = jax.random.normal(k5, (N_LINK, TEXT_IN), jnp.float32)  # (Np, 300)

    params = init_params(k6)
    fused = fuse_params(params)

    prod_out, int_out = interest_rec_forward(
        int_emb, int_text, a_hat_bf16, link_emb, prod_text, dom_emb, fused)
    prod_out = jax.block_until_ready(prod_out)
    int_out = jax.block_until_ready(int_out)

    prod_ref, int_ref = reference_forward(
        int_emb, int_text, a_hat_bf16, link_emb, prod_text, dom_emb, params)

    assert prod_out.shape == (N_LINK, HEAD_OUT)
    assert int_out.shape == (N_INT, HEAD_OUT)
    # tolerance covers MXU f32 multi-pass matmuls + weight-fusion reassociation
    np.testing.assert_allclose(np.asarray(prod_out), np.asarray(prod_ref),
                               rtol=1e-3, atol=1e-3)
    np.testing.assert_allclose(np.asarray(int_out), np.asarray(int_ref),
                               rtol=1e-3, atol=1e-3)

    print("KERNEL_OK")
</pallas_src>

<mosaic_0001>
module attributes {stable_mosaic.version = 11 : i64} {
  func.func @interest_rec_kernel(%arg0: memref<16x50xf32, #tpu.memory_space<vmem>>, %arg1: memref<16x300xf32, #tpu.memory_space<vmem>>, %arg2: memref<16x16xbf16, #tpu.memory_space<vmem>>, %arg3: memref<16x50xf32, #tpu.memory_space<vmem>>, %arg4: memref<16x300xf32, #tpu.memory_space<vmem>>, %arg5: memref<16x30xf32, #tpu.memory_space<vmem>>, %arg6: memref<300x168xf32, #tpu.memory_space<vmem>>, %arg7: memref<1x168xf32, #tpu.memory_space<vmem>>, %arg8: memref<50x60xf32, #tpu.memory_space<vmem>>, %arg9: memref<168x60xf32, #tpu.memory_space<vmem>>, %arg10: memref<1x60xf32, #tpu.memory_space<vmem>>, %arg11: memref<1x60xf32, #tpu.memory_space<vmem>>, %arg12: memref<60x30xf32, #tpu.memory_space<vmem>>, %arg13: memref<1x30xf32, #tpu.memory_space<vmem>>, %arg14: memref<30x128xf32, #tpu.memory_space<vmem>>, %arg15: memref<1x128xf32, #tpu.memory_space<vmem>>, %arg16: memref<50x80xf32, #tpu.memory_space<vmem>>, %arg17: memref<168x80xf32, #tpu.memory_space<vmem>>, %arg18: memref<30x80xf32, #tpu.memory_space<vmem>>, %arg19: memref<1x80xf32, #tpu.memory_space<vmem>>, %arg20: memref<80x128xf32, #tpu.memory_space<vmem>>, %arg21: memref<1x128xf32, #tpu.memory_space<vmem>>, %arg22: memref<16x128xf32, #tpu.memory_space<vmem>>, %arg23: memref<16x128xf32, #tpu.memory_space<vmem>>) attributes {dimension_semantics = [], scalar_prefetch = 0 : i64, scratch_operands = 0 : i64, tpu.core_type = #tpu.core_type<tc>} {
    %c0 = arith.constant 0 : index
    %c0_0 = arith.constant 0 : index
    %0 = vector.load %arg1[%c0, %c0_0] : memref<16x300xf32, #tpu.memory_space<vmem>>, vector<16x300xf32>
    %c0_1 = arith.constant 0 : index
    %c0_2 = arith.constant 0 : index
    %1 = vector.load %arg6[%c0_1, %c0_2] : memref<300x168xf32, #tpu.memory_space<vmem>>, vector<300x168xf32>
    %cst = arith.constant dense<0.000000e+00> : vector<16x168xf32>
    %2 = tpu.matmul %0, %1, %cst {dimension_numbers = #tpu.dot_dimension_numbers<[1], [0], [0], [1], [0, 0, 1, 1], [], []>} : vector<16x300xf32>, vector<300x168xf32>, vector<16x168xf32> -> vector<16x168xf32>
    %c0_3 = arith.constant 0 : index
    %c0_4 = arith.constant 0 : index
    %3 = vector.load %arg7[%c0_3, %c0_4] : memref<1x168xf32, #tpu.memory_space<vmem>>, vector<1x168xf32>
    %4 = vector.broadcast %3 : vector<1x168xf32> to vector<16x168xf32>
    %5 = arith.addf %2, %4 : vector<16x168xf32>
    %cst_5 = arith.constant 0.000000e+00 : f32
    %6 = vector.broadcast %cst_5 : f32 to vector<16x168xf32>
    %7 = arith.maximumf %5, %6 : vector<16x168xf32>
    %c0_6 = arith.constant 0 : index
    %c0_7 = arith.constant 0 : index
    %8 = vector.load %arg4[%c0_6, %c0_7] : memref<16x300xf32, #tpu.memory_space<vmem>>, vector<16x300xf32>
    %c0_8 = arith.constant 0 : index
    %c0_9 = arith.constant 0 : index
    %9 = vector.load %arg6[%c0_8, %c0_9] : memref<300x168xf32, #tpu.memory_space<vmem>>, vector<300x168xf32>
    %cst_10 = arith.constant dense<0.000000e+00> : vector<16x168xf32>
    %10 = tpu.matmul %8, %9, %cst_10 {dimension_numbers = #tpu.dot_dimension_numbers<[1], [0], [0], [1], [0, 0, 1, 1], [], []>} : vector<16x300xf32>, vector<300x168xf32>, vector<16x168xf32> -> vector<16x168xf32>
    %c0_11 = arith.constant 0 : index
    %c0_12 = arith.constant 0 : index
    %11 = vector.load %arg7[%c0_11, %c0_12] : memref<1x168xf32, #tpu.memory_space<vmem>>, vector<1x168xf32>
    %12 = vector.broadcast %11 : vector<1x168xf32> to vector<16x168xf32>
    %13 = arith.addf %10, %12 : vector<16x168xf32>
    %cst_13 = arith.constant 0.000000e+00 : f32
    %14 = vector.broadcast %cst_13 : f32 to vector<16x168xf32>
    %15 = arith.maximumf %13, %14 : vector<16x168xf32>
    %c0_14 = arith.constant 0 : index
    %c0_15 = arith.constant 0 : index
    %16 = vector.load %arg0[%c0_14, %c0_15] : memref<16x50xf32, #tpu.memory_space<vmem>>, vector<16x50xf32>
    %c0_16 = arith.constant 0 : index
    %c0_17 = arith.constant 0 : index
    %17 = vector.load %arg8[%c0_16, %c0_17] : memref<50x60xf32, #tpu.memory_space<vmem>>, vector<50x60xf32>
    %cst_18 = arith.constant dense<0.000000e+00> : vector<16x60xf32>
    %18 = tpu.matmul %16, %17, %cst_18 {dimension_numbers = #tpu.dot_dimension_numbers<[1], [0], [0], [1], [0, 0, 1, 1], [], []>} : vector<16x50xf32>, vector<50x60xf32>, vector<16x60xf32> -> vector<16x60xf32>
    %c0_19 = arith.constant 0 : index
    %c0_20 = arith.constant 0 : index
    %19 = vector.load %arg9[%c0_19, %c0_20] : memref<168x60xf32, #tpu.memory_space<vmem>>, vector<168x60xf32>
    %cst_21 = arith.constant dense<0.000000e+00> : vector<16x60xf32>
    %20 = tpu.matmul %7, %19, %cst_21 {dimension_numbers = #tpu.dot_dimension_numbers<[1], [0], [0], [1], [0, 0, 1, 1], [], []>} : vector<16x168xf32>, vector<168x60xf32>, vector<16x60xf32> -> vector<16x60xf32>
    %21 = arith.addf %18, %20 : vector<16x60xf32>
    %c0_22 = arith.constant 0 : index
    %c0_23 = arith.constant 0 : index
    %22 = vector.load %arg10[%c0_22, %c0_23] : memref<1x60xf32, #tpu.memory_space<vmem>>, vector<1x60xf32>
    %23 = vector.broadcast %22 : vector<1x60xf32> to vector<16x60xf32>
    %24 = arith.addf %21, %23 : vector<16x60xf32>
    %c0_24 = arith.constant 0 : index
    %c0_25 = arith.constant 0 : index
    %25 = vector.load %arg2[%c0_24, %c0_25] : memref<16x16xbf16, #tpu.memory_space<vmem>>, vector<16x16xbf16>
    %26 = arith.extf %25 : vector<16x16xbf16> to vector<16x16xf32>
    %cst_26 = arith.constant dense<0.000000e+00> : vector<16x60xf32>
    %27 = tpu.matmul %26, %24, %cst_26 {dimension_numbers = #tpu.dot_dimension_numbers<[1], [0], [0], [1], [0, 0, 1, 1], [], []>} : vector<16x16xf32>, vector<16x60xf32>, vector<16x60xf32> -> vector<16x60xf32>
    %c0_27 = arith.constant 0 : index
    %c0_28 = arith.constant 0 : index
    %28 = vector.load %arg11[%c0_27, %c0_28] : memref<1x60xf32, #tpu.memory_space<vmem>>, vector<1x60xf32>
    %29 = vector.broadcast %28 : vector<1x60xf32> to vector<16x60xf32>
    %30 = arith.addf %27, %29 : vector<16x60xf32>
    %cst_29 = arith.constant 0.000000e+00 : f32
    %31 = vector.broadcast %cst_29 : f32 to vector<16x60xf32>
    %32 = arith.maximumf %30, %31 : vector<16x60xf32>
    %c0_30 = arith.constant 0 : index
    %c0_31 = arith.constant 0 : index
    %33 = vector.load %arg12[%c0_30, %c0_31] : memref<60x30xf32, #tpu.memory_space<vmem>>, vector<60x30xf32>
    %cst_32 = arith.constant dense<0.000000e+00> : vector<16x30xf32>
    %34 = tpu.matmul %32, %33, %cst_32 {dimension_numbers = #tpu.dot_dimension_numbers<[1], [0], [0], [1], [0, 0, 1, 1], [], []>} : vector<16x60xf32>, vector<60x30xf32>, vector<16x30xf32> -> vector<16x30xf32>
    %cst_33 = arith.constant dense<0.000000e+00> : vector<16x30xf32>
    %35 = tpu.matmul %26, %34, %cst_33 {dimension_numbers = #tpu.dot_dimension_numbers<[1], [0], [0], [1], [0, 0, 1, 1], [], []>} : vector<16x16xf32>, vector<16x30xf32>, vector<16x30xf32> -> vector<16x30xf32>
    %c0_34 = arith.constant 0 : index
    %c0_35 = arith.constant 0 : index
    %36 = vector.load %arg13[%c0_34, %c0_35] : memref<1x30xf32, #tpu.memory_space<vmem>>, vector<1x30xf32>
    %37 = vector.broadcast %36 : vector<1x30xf32> to vector<16x30xf32>
    %38 = arith.addf %35, %37 : vector<16x30xf32>
    %cst_36 = arith.constant 0.000000e+00 : f32
    %39 = vector.broadcast %cst_36 : f32 to vector<16x30xf32>
    %40 = arith.maximumf %38, %39 : vector<16x30xf32>
    %c0_37 = arith.constant 0 : index
    %c0_38 = arith.constant 0 : index
    %41 = vector.load %arg14[%c0_37, %c0_38] : memref<30x128xf32, #tpu.memory_space<vmem>>, vector<30x128xf32>
    %cst_39 = arith.constant dense<0.000000e+00> : vector<16x128xf32>
    %42 = tpu.matmul %40, %41, %cst_39 {dimension_numbers = #tpu.dot_dimension_numbers<[1], [0], [0], [1], [0, 0, 1, 1], [], []>} : vector<16x30xf32>, vector<30x128xf32>, vector<16x128xf32> -> vector<16x128xf32>
    %c0_40 = arith.constant 0 : index
    %c0_41 = arith.constant 0 : index
    %43 = vector.load %arg15[%c0_40, %c0_41] : memref<1x128xf32, #tpu.memory_space<vmem>>, vector<1x128xf32>
    %44 = vector.broadcast %43 : vector<1x128xf32> to vector<16x128xf32>
    %45 = arith.addf %42, %44 : vector<16x128xf32>
    %c0_42 = arith.constant 0 : index
    %c0_43 = arith.constant 0 : index
    %46 = vector.load %arg23[%c0_42, %c0_43] : memref<16x128xf32, #tpu.memory_space<vmem>>, vector<16x128xf32>
    tpu.vector_store %arg23[%c0_42, %c0_43], %45 {strides = array<i32>} : memref<16x128xf32, #tpu.memory_space<vmem>>, vector<16x128xf32>,
    %c0_44 = arith.constant 0 : index
    %c0_45 = arith.constant 0 : index
    %47 = vector.load %arg3[%c0_44, %c0_45] : memref<16x50xf32, #tpu.memory_space<vmem>>, vector<16x50xf32>
    %c0_46 = arith.constant 0 : index
    %c0_47 = arith.constant 0 : index
    %48 = vector.load %arg16[%c0_46, %c0_47] : memref<50x80xf32, #tpu.memory_space<vmem>>, vector<50x80xf32>
    %cst_48 = arith.constant dense<0.000000e+00> : vector<16x80xf32>
    %49 = tpu.matmul %47, %48, %cst_48 {dimension_numbers = #tpu.dot_dimension_numbers<[1], [0], [0], [1], [0, 0, 1, 1], [], []>} : vector<16x50xf32>, vector<50x80xf32>, vector<16x80xf32> -> vector<16x80xf32>
    %c0_49 = arith.constant 0 : index
    %c0_50 = arith.constant 0 : index
    %50 = vector.load %arg17[%c0_49, %c0_50] : memref<168x80xf32, #tpu.memory_space<vmem>>, vector<168x80xf32>
    %cst_51 = arith.constant dense<0.000000e+00> : vector<16x80xf32>
    %51 = tpu.matmul %15, %50, %cst_51 {dimension_numbers = #tpu.dot_dimension_numbers<[1], [0], [0], [1], [0, 0, 1, 1], [], []>} : vector<16x168xf32>, vector<168x80xf32>, vector<16x80xf32> -> vector<16x80xf32>
    %52 = arith.addf %49, %51 : vector<16x80xf32>
    %c0_52 = arith.constant 0 : index
    %c0_53 = arith.constant 0 : index
    %53 = vector.load %arg5[%c0_52, %c0_53] : memref<16x30xf32, #tpu.memory_space<vmem>>, vector<16x30xf32>
    %c0_54 = arith.constant 0 : index
    %c0_55 = arith.constant 0 : index
    %54 = vector.load %arg18[%c0_54, %c0_55] : memref<30x80xf32, #tpu.memory_space<vmem>>, vector<30x80xf32>
    %cst_56 = arith.constant dense<0.000000e+00> : vector<16x80xf32>
    %55 = tpu.matmul %53, %54, %cst_56 {dimension_numbers = #tpu.dot_dimension_numbers<[1], [0], [0], [1], [0, 0, 1, 1], [], []>} : vector<16x30xf32>, vector<30x80xf32>, vector<16x80xf32> -> vector<16x80xf32>
    %56 = arith.addf %52, %55 : vector<16x80xf32>
    %c0_57 = arith.constant 0 : index
    %c0_58 = arith.constant 0 : index
    %57 = vector.load %arg19[%c0_57, %c0_58] : memref<1x80xf32, #tpu.memory_space<vmem>>, vector<1x80xf32>
    %58 = vector.broadcast %57 : vector<1x80xf32> to vector<16x80xf32>
    %59 = arith.addf %56, %58 : vector<16x80xf32>
    %cst_59 = arith.constant 0.000000e+00 : f32
    %60 = vector.broadcast %cst_59 : f32 to vector<16x80xf32>
    %61 = arith.maximumf %59, %60 : vector<16x80xf32>
    %c0_60 = arith.constant 0 : index
    %c0_61 = arith.constant 0 : index
    %62 = vector.load %arg20[%c0_60, %c0_61] : memref<80x128xf32, #tpu.memory_space<vmem>>, vector<80x128xf32>
    %cst_62 = arith.constant dense<0.000000e+00> : vector<16x128xf32>
    %63 = tpu.matmul %61, %62, %cst_62 {dimension_numbers = #tpu.dot_dimension_numbers<[1], [0], [0], [1], [0, 0, 1, 1], [], []>} : vector<16x80xf32>, vector<80x128xf32>, vector<16x128xf32> -> vector<16x128xf32>
    %c0_63 = arith.constant 0 : index
    %c0_64 = arith.constant 0 : index
    %64 = vector.load %arg21[%c0_63, %c0_64] : memref<1x128xf32, #tpu.memory_space<vmem>>, vector<1x128xf32>
    %65 = vector.broadcast %64 : vector<1x128xf32> to vector<16x128xf32>
    %66 = arith.addf %63, %65 : vector<16x128xf32>
    %c0_65 = arith.constant 0 : index
    %c0_66 = arith.constant 0 : index
    %67 = vector.load %arg22[%c0_65, %c0_66] : memref<16x128xf32, #tpu.memory_space<vmem>>, vector<16x128xf32>
    tpu.vector_store %arg22[%c0_65, %c0_66], %66 {strides = array<i32>} : memref<16x128xf32, #tpu.memory_space<vmem>>, vector<16x128xf32>,
    return
  }
}

</mosaic_0001>

<llo_original>
// kernel: tpu_custom_call.1
$region0: #{tpu_custom_call.1}
  #allocation0 [shape = 'u32[]', space=smem, size = 0x4, offset = 0x4, fixed_abs, tag = 'smem constant byte address 0x4 - core index']
  #allocation1 [shape = 'u32[144,128]{1,0:T(1,128)}', space=vmem, size = 0x12000, scoped, tag = 'internal scratch']
  %s0 = inlined_call_operand.vmem [shape: f32[16,50], index: 0, kind: input, shape index: {}]
  %s1 = inlined_call_operand.vmem [shape: f32[16,300], index: 1, kind: input, shape index: {}]
  %s2 = inlined_call_operand.vmem [shape: bf16[16,16], index: 2, kind: input, shape index: {}]
  %s3 = inlined_call_operand.vmem [shape: f32[16,50], index: 3, kind: input, shape index: {}]
  %s4 = inlined_call_operand.vmem [shape: f32[16,300], index: 4, kind: input, shape index: {}]
  %s5 = inlined_call_operand.vmem [shape: f32[16,30], index: 5, kind: input, shape index: {}]
  %s6 = inlined_call_operand.vmem [shape: f32[300,168], index: 6, kind: input, shape index: {}]
  %s7 = inlined_call_operand.vmem [shape: f32[1,168], index: 7, kind: input, shape index: {}]
  %s8 = inlined_call_operand.vmem [shape: f32[50,60], index: 8, kind: input, shape index: {}]
  %s9 = inlined_call_operand.vmem [shape: f32[168,60], index: 9, kind: input, shape index: {}]
  %s10 = inlined_call_operand.vmem [shape: f32[1,60], index: 10, kind: input, shape index: {}]
  %s11 = inlined_call_operand.vmem [shape: f32[1,60], index: 11, kind: input, shape index: {}]
  %s12 = inlined_call_operand.vmem [shape: f32[60,30], index: 12, kind: input, shape index: {}]
  %s13 = inlined_call_operand.vmem [shape: f32[1,30], index: 13, kind: input, shape index: {}]
  %s14 = inlined_call_operand.vmem [shape: f32[30,128], index: 14, kind: input, shape index: {}]
  %s15 = inlined_call_operand.vmem [shape: f32[1,128], index: 15, kind: input, shape index: {}]
  %s16 = inlined_call_operand.vmem [shape: f32[50,80], index: 16, kind: input, shape index: {}]
  %s17 = inlined_call_operand.vmem [shape: f32[168,80], index: 17, kind: input, shape index: {}]
  %s18 = inlined_call_operand.vmem [shape: f32[30,80], index: 18, kind: input, shape index: {}]
  %s19 = inlined_call_operand.vmem [shape: f32[1,80], index: 19, kind: input, shape index: {}]
  %s20 = inlined_call_operand.vmem [shape: f32[80,128], index: 20, kind: input, shape index: {}]
  %s21 = inlined_call_operand.vmem [shape: f32[1,128], index: 21, kind: input, shape index: {}]
  %s22 = inlined_call_operand.hbm [shape: f32[16,128], index: 22, kind: output, shape index: {0}]
  %s23 = inlined_call_operand.hbm [shape: f32[16,128], index: 23, kind: output, shape index: {1}]
  %24 = xla_tuple %s22, %s23
  %s25 = sld [smem:[#allocation0]]
  $region106: #{tpu_custom_call.1} parent=0
    _
  %s27 = ssub.s32 1, %s25
  %s28 = scalar_select 0, %s27, %s25
  $region1: #{tpu_custom_call.1} parent=0
    #allocation2 [shape = 'u8[8192]{0}', space=vmem, size = 0x2000, scoped, tag = 'output window, operand 0, single buffered']
    #allocation3 [shape = 's32[1]{0}', space=sflag, size = 0x4, scoped, tag = 'scoped memory for tpu_custom_call.1']
    #allocation4 [shape = 'u8[8192]{0}', space=vmem, size = 0x2000, scoped, tag = 'output window, operand 1, single buffered']
    #allocation5 [shape = 's32[1]{0}', space=sflag, size = 0x4, scoped, tag = 'scoped memory for tpu_custom_call.1']
    %29 = vsyncpa [#allocation3], 0
    %30 = vsyncpa [#allocation5], 0
    // Predicated region
    $region2: #{tpu_custom_call.1} parent=1 // pred_check
      _
    $region3: #{tpu_custom_call.1} parent=1 // pred_check_branch
      %32 = sbr.rel (0) target = $region5
    $region4: #{tpu_custom_call.1} parent=1 // pred_region
      _
    $region5: #{tpu_custom_call.1} parent=1 // pred_fallthru
      _
    // Predicated region
    $region6: #{tpu_custom_call.1} parent=1 // pred_check
      _
    $region7: #{tpu_custom_call.1} parent=1 // pred_check_branch
      %34 = sbr.rel (0) target = $region9
    $region8: #{tpu_custom_call.1} parent=1 // pred_region
      _
    $region9: #{tpu_custom_call.1} parent=1 // pred_fallthru
      _
    // Predicated region
    $region10: #{tpu_custom_call.1} parent=1 // pred_check
      _
    $region11: #{tpu_custom_call.1} parent=1 // pred_check_branch
      %36 = sbr.rel (0) target = $region13
    $region12: #{tpu_custom_call.1} parent=1 // pred_region
      _
    $region13: #{tpu_custom_call.1} parent=1 // pred_fallthru
      _
    // Predicated region
    $region14: #{tpu_custom_call.1} parent=1 // pred_check
      _
    $region15: #{tpu_custom_call.1} parent=1 // pred_check_branch
      %38 = sbr.rel (0) target = $region17
    $region16: #{tpu_custom_call.1} parent=1 // pred_region
      _
    $region17: #{tpu_custom_call.1} parent=1 // pred_fallthru
      _
    // Predicated region
    $region18: #{tpu_custom_call.1} parent=1 // pred_check
      _
    $region19: #{tpu_custom_call.1} parent=1 // pred_check_branch
      %40 = sbr.rel (0) target = $region21
    $region20: #{tpu_custom_call.1} parent=1 // pred_region
      _
    $region21: #{tpu_custom_call.1} parent=1 // pred_fallthru
      _
    // Predicated region
    $region22: #{tpu_custom_call.1} parent=1 // pred_check
      _
    $region23: #{tpu_custom_call.1} parent=1 // pred_check_branch
      %42 = sbr.rel (0) target = $region25
    $region24: #{tpu_custom_call.1} parent=1 // pred_region
      _
    $region25: #{tpu_custom_call.1} parent=1 // pred_fallthru
      _
    // Predicated region
    $region26: #{tpu_custom_call.1} parent=1 // pred_check
      _
    $region27: #{tpu_custom_call.1} parent=1 // pred_check_branch
      %44 = sbr.rel (0) target = $region29
    $region28: #{tpu_custom_call.1} parent=1 // pred_region
      _
    $region29: #{tpu_custom_call.1} parent=1 // pred_fallthru
      _
    // Predicated region
    $region30: #{tpu_custom_call.1} parent=1 // pred_check
      _
    $region31: #{tpu_custom_call.1} parent=1 // pred_check_branch
      %46 = sbr.rel (0) target = $region33
    $region32: #{tpu_custom_call.1} parent=1 // pred_region
      _
    $region33: #{tpu_custom_call.1} parent=1 // pred_fallthru
      _
    // Predicated region
    $region34: #{tpu_custom_call.1} parent=1 // pred_check
      _
    $region35: #{tpu_custom_call.1} parent=1 // pred_check_branch
      %48 = sbr.rel (0) target = $region37
    $region36: #{tpu_custom_call.1} parent=1 // pred_region
      _
    $region37: #{tpu_custom_call.1} parent=1 // pred_fallthru
      _
    // Predicated region
    $region38: #{tpu_custom_call.1} parent=1 // pred_check
      _
    $region39: #{tpu_custom_call.1} parent=1 // pred_check_branch
      %50 = sbr.rel (0) target = $region41
    $region40: #{tpu_custom_call.1} parent=1 // pred_region
      _
    $region41: #{tpu_custom_call.1} parent=1 // pred_fallthru
      _
    // Predicated region
    $region42: #{tpu_custom_call.1} parent=1 // pred_check
      _
    $region43: #{tpu_custom_call.1} parent=1 // pred_check_branch
      %52 = sbr.rel (0) target = $region45
    $region44: #{tpu_custom_call.1} parent=1 // pred_region
      _
    $region45: #{tpu_custom_call.1} parent=1 // pred_fallthru
      _
    // Predicated region
    $region46: #{tpu_custom_call.1} parent=1 // pred_check
      _
    $region47: #{tpu_custom_call.1} parent=1 // pred_check_branch
      %54 = sbr.rel (0) target = $region49
    $region48: #{tpu_custom_call.1} parent=1 // pred_region
      _
    $region49: #{tpu_custom_call.1} parent=1 // pred_fallthru
      _
    // Predicated region
    $region50: #{tpu_custom_call.1} parent=1 // pred_check
      _
    $region51: #{tpu_custom_call.1} parent=1 // pred_check_branch
      %56 = sbr.rel (0) target = $region53
    $region52: #{tpu_custom_call.1} parent=1 // pred_region
      _
    $region53: #{tpu_custom_call.1} parent=1 // pred_fallthru
      _
    // Predicated region
    $region54: #{tpu_custom_call.1} parent=1 // pred_check
      _
    $region55: #{tpu_custom_call.1} parent=1 // pred_check_branch
      %58 = sbr.rel (0) target = $region57
    $region56: #{tpu_custom_call.1} parent=1 // pred_region
      _
    $region57: #{tpu_custom_call.1} parent=1 // pred_fallthru
      _
    // Predicated region
    $region58: #{tpu_custom_call.1} parent=1 // pred_check
      _
    $region59: #{tpu_custom_call.1} parent=1 // pred_check_branch
      %60 = sbr.rel (0) target = $region61
    $region60: #{tpu_custom_call.1} parent=1 // pred_region
      _
    $region61: #{tpu_custom_call.1} parent=1 // pred_fallthru
      _
    // Predicated region
    $region62: #{tpu_custom_call.1} parent=1 // pred_check
      _
    $region63: #{tpu_custom_call.1} parent=1 // pred_check_branch
      %62 = sbr.rel (0) target = $region65
    $region64: #{tpu_custom_call.1} parent=1 // pred_region
      _
    $region65: #{tpu_custom_call.1} parent=1 // pred_fallthru
      _
    // Predicated region
    $region66: #{tpu_custom_call.1} parent=1 // pred_check
      _
    $region67: #{tpu_custom_call.1} parent=1 // pred_check_branch
      %64 = sbr.rel (0) target = $region69
    $region68: #{tpu_custom_call.1} parent=1 // pred_region
      _
    $region69: #{tpu_custom_call.1} parent=1 // pred_fallthru
      _
    // Predicated region
    $region70: #{tpu_custom_call.1} parent=1 // pred_check
      _
    $region71: #{tpu_custom_call.1} parent=1 // pred_check_branch
      %66 = sbr.rel (0) target = $region73
    $region72: #{tpu_custom_call.1} parent=1 // pred_region
      _
    $region73: #{tpu_custom_call.1} parent=1 // pred_fallthru
      _
    // Predicated region
    $region74: #{tpu_custom_call.1} parent=1 // pred_check
      _
    $region75: #{tpu_custom_call.1} parent=1 // pred_check_branch
      %68 = sbr.rel (0) target = $region77
    $region76: #{tpu_custom_call.1} parent=1 // pred_region
      _
    $region77: #{tpu_custom_call.1} parent=1 // pred_fallthru
      _
    // Predicated region
    $region78: #{tpu_custom_call.1} parent=1 // pred_check
      _
    $region79: #{tpu_custom_call.1} parent=1 // pred_check_branch
      %70 = sbr.rel (0) target = $region81
    $region80: #{tpu_custom_call.1} parent=1 // pred_region
      _
    $region81: #{tpu_custom_call.1} parent=1 // pred_fallthru
      _
    // Predicated region
    $region82: #{tpu_custom_call.1} parent=1 // pred_check
      _
    $region83: #{tpu_custom_call.1} parent=1 // pred_check_branch
      %72 = sbr.rel (0) target = $region85
    $region84: #{tpu_custom_call.1} parent=1 // pred_region
      _
    $region85: #{tpu_custom_call.1} parent=1 // pred_fallthru
      _
    // Predicated region
    $region86: #{tpu_custom_call.1} parent=1 // pred_check
      _
    $region87: #{tpu_custom_call.1} parent=1 // pred_check_branch
      %74 = sbr.rel (0) target = $region89
    $region88: #{tpu_custom_call.1} parent=1 // pred_region
      _
    $region89: #{tpu_custom_call.1} parent=1 // pred_fallthru
      _
    %v75 = vld [vmem:[%s1] sm:$0xff]
    %v76 = vld [vmem:[%s1 + $0x8] sm:$0xff]
    %v77 = vld [vmem:[%s1 + $0x10] sm:$0xff]
    %v78 = vld [vmem:[%s1 + $0x18] sm:$0xff]
    %v79 = vld [vmem:[%s1 + $0x20] sm:$0xff]
    %v80 = vld [vmem:[%s1 + $0x28] sm:$0xff]
    %v81 = vld [vmem:[%s6] sm:$0xff]
    %v82 = vld [vmem:[%s6 + $0x8] sm:$0xff]
    %v83 = vld [vmem:[%s6 + $0x10] sm:$0xff]
    %v84 = vld [vmem:[%s6 + $0x18] sm:$0xff]
    %v85 = vld [vmem:[%s6 + $0x20] sm:$0xff]
    %v86 = vld [vmem:[%s6 + $0x28] sm:$0xff]
    %v87 = vld [vmem:[%s6 + $0x30] sm:$0xff]
    %v88 = vld [vmem:[%s6 + $0x38] sm:$0xff]
    %v89 = vld [vmem:[%s6 + $0x40] sm:$0xff]
    %v90 = vld [vmem:[%s6 + $0x48] sm:$0xff]
    %v91 = vld [vmem:[%s6 + $0x50] sm:$0xff]
    %v92 = vld [vmem:[%s6 + $0x58] sm:$0xff]
    %v93 = vld [vmem:[%s6 + $0x60] sm:$0xff]
    %v94 = vld [vmem:[%s6 + $0x68] sm:$0xff]
    %v95 = vld [vmem:[%s6 + $0x70] sm:$0xff]
    %v96 = vld [vmem:[%s6 + $0x78] sm:$0xff]
    %v97 = vld [vmem:[%s6 + $0x80] sm:$0xff]
    %v98 = vld [vmem:[%s6 + $0x88] sm:$0xff]
    %v99 = vld [vmem:[%s6 + $0x90] sm:$0xff]
    %v100 = vld [vmem:[%s6 + $0x98] sm:$0xff]
    %v101 = vld [vmem:[%s6 + $0xa0] sm:$0xff]
    %v102 = vld [vmem:[%s6 + $0xa8] sm:$0xff]
    %v103 = vld [vmem:[%s6 + $0xb0] sm:$0xff]
    %v104 = vld [vmem:[%s6 + $0xb8] sm:$0xff]
    %v105 = vld [vmem:[%s6 + $0xc0] sm:$0xff]
    %v106 = vld [vmem:[%s6 + $0xc8] sm:$0xff]
    %v107 = vld [vmem:[%s6 + $0xd0] sm:$0xff]
    %v108 = vld [vmem:[%s6 + $0xd8] sm:$0xff]
    %v109 = vld [vmem:[%s6 + $0xe0] sm:$0xff]
    %v110 = vld [vmem:[%s6 + $0xe8] sm:$0xff]
    %v111 = vld [vmem:[%s6 + $0xf0] sm:$0xff]
    %v112 = vld [vmem:[%s6 + $0xf8] sm:$0xff]
    %v113 = vld [vmem:[%s6 + $0x100] sm:$0xff]
    %v114 = vld [vmem:[%s6 + $0x108] sm:$0xff]
    %v115 = vld [vmem:[%s6 + $0x110] sm:$0xff]
    %v116 = vld [vmem:[%s6 + $0x118] sm:$0xff]
    %v117 = vld [vmem:[%s6 + $0x120] sm:$0xff]
    %v118 = vld [vmem:[%s6 + $0x128] sm:$0xff]
    %v119 = vld [vmem:[%s6 + $0x130] sm:$0xff]
    %v120 = vld [vmem:[%s6 + $0x138] sm:$0xff]
    %v121 = vld [vmem:[%s6 + $0x140] sm:$0xff]
    %v122 = vld [vmem:[%s6 + $0x148] sm:$0xff]
    %v123 = vld [vmem:[%s6 + $0x150] sm:$0xff]
    %v124 = vld [vmem:[%s6 + $0x158] sm:$0xff]
    %v125 = vld [vmem:[%s6 + $0x160] sm:$0xff]
    %v126 = vld [vmem:[%s6 + $0x168] sm:$0xff]
    %v127 = vld [vmem:[%s6 + $0x170] sm:$0xff]
    %v128 = vld [vmem:[%s6 + $0x178] sm:$0xff]
    %v129 = vld [vmem:[%s6 + $0x180] sm:$0xff]
    %v130 = vld [vmem:[%s6 + $0x188] sm:$0xff]
    %v131 = vld [vmem:[%s6 + $0x190] sm:$0xff]
    %v132 = vld [vmem:[%s6 + $0x198] sm:$0xff]
    %v133 = vld [vmem:[%s6 + $0x1a0] sm:$0xff]
    %v134 = vld [vmem:[%s6 + $0x1a8] sm:$0xff]
    %v135 = vld [vmem:[%s6 + $0x1b0] sm:$0xff]
    %v136 = vld [vmem:[%s6 + $0x1b8] sm:$0xff]
    %v137 = vld [vmem:[%s6 + $0x1c0] sm:$0xff]
    %v138 = vld [vmem:[%s6 + $0x1c8] sm:$0xff]
    %v139 = vld [vmem:[%s6 + $0x1d0] sm:$0xff]
    %v140 = vld [vmem:[%s6 + $0x1d8] sm:$0xff]
    %v141 = vld [vmem:[%s6 + $0x1e0] sm:$0xff]
    %v142 = vld [vmem:[%s6 + $0x1e8] sm:$0xff]
    %v143 = vld [vmem:[%s6 + $0x1f0] sm:$0xff]
    %v144 = vld [vmem:[%s6 + $0x1f8] sm:$0xff]
    %v145 = vld [vmem:[%s6 + $0x200] sm:$0xff]
    %v146 = vld [vmem:[%s6 + $0x208] sm:$0xff]
    %v147 = vld [vmem:[%s6 + $0x210] sm:$0xff]
    %v148 = vld [vmem:[%s6 + $0x218] sm:$0xff]
    %v149 = vld [vmem:[%s6 + $0x220] sm:$0xff]
    %v150 = vld [vmem:[%s6 + $0x228] sm:$0xff]
    %v151 = vld [vmem:[%s6 + $0x230] sm:$0xff]
    %v152 = vld [vmem:[%s6 + $0x238] sm:$0xff]
    %v153 = vld [vmem:[%s6 + $0x240] sm:$0xff]
    %v154 = vld [vmem:[%s6 + $0x248] sm:$0xff]
    %v155 = vld [vmem:[%s6 + $0x250] sm:$0xf]
    %v156 = vld [vmem:[%s6 + $0x258] sm:$0xf]
    %v157 = vld [vmem:[%s7] sm:$0x3]
    %v159 = vlaneseq
    %v160 = vshrl.u32 %v159, 7
    %v161 = vsub.s32 0, %v160
    %v162 = vrot.slane %v157, %v161
    %v163 = vlaneseq
    %v164 = vshrl.u32 %v163, 7
    %v165 = vsub.s32 1, %v164
    %v166 = vrot.slane %v157, %v165
    %vm169 = vcmask 359424
    %v171 = vsel %vm169, %v77, 0
    %v174 = vsel %vm169, %v80, 0
    %vm176 = vcmask 1043456
    %v178 = vsel %vm176, %v155, 0
    %v181 = vsel %vm176, %v156, 0
    %183 = vmatprep.subr.mxu0 %v82
    %184 = vmatpush1.msra.mxu0 %v81
    %185 = vmatprep.subr.mxu0 %v84
    %186 = vmatpush1.msra.mxu0 %v83
    %187 = vmatprep.subr.mxu0 %v86
    %188 = vmatpush1.msra.mxu0 %v85
    %189 = vmatprep.subr.mxu0 %v88
    %190 = vmatpush1.msra.mxu0 %v87
    %191 = vmatprep.subr.mxu0 %v90
    %192 = vmatpush1.msra.mxu0 %v89
    %193 = vmatprep.subr.mxu0 %v92
    %194 = vmatpush1.msra.mxu0 %v91
    %195 = vmatprep.subr.mxu0 %v94
    %196 = vmatpush1.msra.mxu0 %v93
    %197 = vmatprep.subr.mxu0 %v96
    %198 = vmatpush1.msra.mxu0 %v95
    %199 = vmatprep.subr.mxu0 %v98
    %200 = vmatpush1.msra.mxu0 %v97
    %201 = vmatprep.subr.mxu0 %v100
    %202 = vmatpush1.msra.mxu0 %v99
    %203 = vmatprep.subr.mxu0 %v102
    %204 = vmatpush1.msra.mxu0 %v101
    %205 = vmatprep.subr.mxu0 %v104
    %206 = vmatpush1.msra.mxu0 %v103
    %207 = vmatprep.subr.mxu0 %v106
    %208 = vmatpush1.msra.mxu0 %v105
    %209 = vmatprep.subr.mxu0 %v108
    %210 = vmatpush1.msra.mxu0 %v107
    %211 = vmatprep.subr.mxu0 %v110
    %212 = vmatpush1.msra.mxu0 %v109
    %213 = vmatprep.subr.mxu0 %v112
    %214 = vmatpush1.msra.mxu0 %v111
    %215 = vmatprep.subr.mxu0 %v114
    %216 = vmatpush1.msra.mxu0 %v113
    %217 = vmatprep.subr.mxu0 %v116
    %218 = vmatpush1.msra.mxu0 %v115
    %219 = vmatprep.subr.mxu0 %v118
    %220 = vmatpush1.msra.mxu0 %v117
    %221 = vmatprep.subr.mxu0 %v120
    %222 = vmatpush1.msra.mxu0 %v119
    %223 = vmatprep.subr.mxu0 %v122
    %224 = vmatpush1.msra.mxu0 %v121
    %225 = vmatprep.subr.mxu0 %v124
    %226 = vmatpush1.msra.mxu0 %v123
    %227 = vmatprep.subr.mxu0 %v126
    %228 = vmatpush1.msra.mxu0 %v125
    %229 = vmatprep.subr.mxu0 %v128
    %230 = vmatpush1.msra.mxu0 %v127
    %231 = vmatprep.subr.mxu0 %v130
    %232 = vmatpush1.msra.mxu0 %v129
    %233 = vmatprep.subr.mxu0 %v132
    %234 = vmatpush1.msra.mxu0 %v131
    %235 = vmatprep.subr.mxu0 %v134
    %236 = vmatpush1.msra.mxu0 %v133
    %237 = vmatprep.subr.mxu0 %v136
    %238 = vmatpush1.msra.mxu0 %v135
    %239 = vmatprep.subr.mxu0 %v138
    %240 = vmatpush1.msra.mxu0 %v137
    %241 = vmatprep.subr.mxu0 %v140
    %242 = vmatpush1.msra.mxu0 %v139
    %243 = vmatprep.subr.mxu0 %v142
    %244 = vmatpush1.msra.mxu0 %v141
    %245 = vmatprep.subr.mxu0 %v144
    %246 = vmatpush1.msra.mxu0 %v143
    %247 = vmatprep.mubr.f32.mxu0 %v76
    %248 = vmatmul.mubr.f32.gmra.mrb[0].mxu0 %v75
    %v249 = vpop.f32.mrb[0].mxu0
    %v250 = vadd.f32 %v162, %v249
    %v251 = vpop.f32.mrb[0].mxu0
    %v252 = vadd.f32 %v166, %v251
    %253 = vmatprep.mubr.f32.mxu0 %v79
    %254 = vmatmul.mubr.f32.gmra.mrb[0].mxu0 %v78
    %v255 = vpop.f32.mrb[0].mxu0
    %v256 = vadd.f32 %v162, %v255
    %v257 = vpop.f32.mrb[0].mxu0
    %v258 = vadd.f32 %v166, %v257
    %259 = vdwg.mxu0
    %260 = vmatprep.subr.mxu0 %v146
    %261 = vmatpush1.msra.mxu0 %v145
    %262 = vmatprep.subr.mxu0 %v148
    %263 = vmatpush1.msra.mxu0 %v147
    %264 = vmatprep.subr.mxu0 %v150
    %265 = vmatpush1.msra.mxu0 %v149
    %266 = vmatprep.subr.mxu0 %v152
    %267 = vmatpush1.msra.mxu0 %v151
    %268 = vmatprep.subr.mxu0 %v154
    %269 = vmatpush1.msra.mxu0 %v153
    %270 = vmatprep.subr.mxu0 %v181
    %271 = vmatpush1.msra.mxu0 %v178
    %272 = vmatprep.subr.mxu0 0.0
    %273 = vmatpush1.msra.mxu0 0.0
    %274 = vmatprep.subr.mxu0 0.0
    %275 = vmatpush1.msra.mxu0 0.0
    %276 = vmatprep.subr.mxu0 0.0
    %277 = vmatpush1.msra.mxu0 0.0
    %278 = vmatprep.subr.mxu0 0.0
    %279 = vmatpush1.msra.mxu0 0.0
    %280 = vmatprep.subr.mxu0 0.0
    %281 = vmatpush1.msra.mxu0 0.0
    %282 = vmatprep.subr.mxu0 0.0
    %283 = vmatpush1.msra.mxu0 0.0
    %284 = vmatprep.subr.mxu0 0.0
    %285 = vmatpush1.msra.mxu0 0.0
    %286 = vmatprep.subr.mxu0 0.0
    %287 = vmatpush1.msra.mxu0 0.0
    %288 = vmatprep.subr.mxu0 0.0
    %289 = vmatpush1.msra.mxu0 0.0
    %290 = vmatprep.subr.mxu0 0.0
    %291 = vmatpush1.msra.mxu0 0.0
    %292 = vmatprep.subr.mxu0 0.0
    %293 = vmatpush1.msra.mxu0 0.0
    %294 = vmatprep.subr.mxu0 0.0
    %295 = vmatpush1.msra.mxu0 0.0
    %296 = vmatprep.subr.mxu0 0.0
    %297 = vmatpush1.msra.mxu0 0.0
    %298 = vmatprep.subr.mxu0 0.0
    %299 = vmatpush1.msra.mxu0 0.0
    %300 = vmatprep.subr.mxu0 0.0
    %301 = vmatpush1.msra.mxu0 0.0
    %302 = vmatprep.subr.mxu0 0.0
    %303 = vmatpush1.msra.mxu0 0.0
    %304 = vmatprep.subr.mxu0 0.0
    %305 = vmatpush1.msra.mxu0 0.0
    %306 = vmatprep.subr.mxu0 0.0
    %307 = vmatpush1.msra.mxu0 0.0
    %308 = vmatprep.subr.mxu0 0.0
    %309 = vmatpush1.msra.mxu0 0.0
    %310 = vmatprep.subr.mxu0 0.0
    %311 = vmatpush1.msra.mxu0 0.0
    %312 = vmatprep.subr.mxu0 0.0
    %313 = vmatpush1.msra.mxu0 0.0
    %314 = vmatprep.subr.mxu0 0.0
    %315 = vmatpush1.msra.mxu0 0.0
    %316 = vmatprep.subr.mxu0 0.0
    %317 = vmatpush1.msra.mxu0 0.0
    %318 = vmatprep.subr.mxu0 0.0
    %319 = vmatpush1.msra.mxu0 0.0
    %320 = vmatprep.subr.mxu0 0.0
    %321 = vmatpush1.msra.mxu0 0.0
    %322 = vmatprep.subr.mxu0 0.0
    %323 = vmatpush1.msra.mxu0 0.0
    %324 = vmatprep.mubr.f32.mxu0 0.0
    %325 = vmatmul.mubr.f32.gmra.mrb[0].mxu0 %v171
    %v326 = vpop.f32.mrb[0].mxu0
    %v327 = vadd.f32 %v250, %v326
    %v328 = vpop.f32.mrb[0].mxu0
    %v329 = vadd.f32 %v252, %v328
    %330 = vmatprep.mubr.f32.mxu0 0.0
    %331 = vmatmul.mubr.f32.gmra.mrb[0].mxu0 %v174
    %v332 = vpop.f32.mrb[0].mxu0
    %v333 = vadd.f32 %v256, %v332
    %v334 = vpop.f32.mrb[0].mxu0
    %v335 = vadd.f32 %v258, %v334
    %336 = vdwg.mxu0
    %v337 = vmax.f32 %v327, 0.0
    %v338 = vmax.f32 %v329, 0.0
    %v339 = vmax.f32 %v333, 0.0
    %v340 = vmax.f32 %v335, 0.0
    %v341 = vld [vmem:[%s4] sm:$0xff]
    %v342 = vld [vmem:[%s4 + $0x8] sm:$0xff]
    %v343 = vld [vmem:[%s4 + $0x10] sm:$0xff]
    %v344 = vld [vmem:[%s4 + $0x18] sm:$0xff]
    %v345 = vld [vmem:[%s4 + $0x20] sm:$0xff]
    %v346 = vld [vmem:[%s4 + $0x28] sm:$0xff]
    %v348 = vsel %vm169, %v343, 0
    %v351 = vsel %vm169, %v346, 0
    %353 = vmatprep.subr.mxu0 %v82
    %354 = vmatpush1.msra.mxu0 %v81
    %355 = vmatprep.subr.mxu0 %v84
    %356 = vmatpush1.msra.mxu0 %v83
    %357 = vmatprep.subr.mxu0 %v86
    %358 = vmatpush1.msra.mxu0 %v85
    %359 = vmatprep.subr.mxu0 %v88
    %360 = vmatpush1.msra.mxu0 %v87
    %361 = vmatprep.subr.mxu0 %v90
    %362 = vmatpush1.msra.mxu0 %v89
    %363 = vmatprep.subr.mxu0 %v92
    %364 = vmatpush1.msra.mxu0 %v91
    %365 = vmatprep.subr.mxu0 %v94
    %366 = vmatpush1.msra.mxu0 %v93
    %367 = vmatprep.subr.mxu0 %v96
    %368 = vmatpush1.msra.mxu0 %v95
    %369 = vmatprep.subr.mxu0 %v98
    %370 = vmatpush1.msra.mxu0 %v97
    %371 = vmatprep.subr.mxu0 %v100
    %372 = vmatpush1.msra.mxu0 %v99
    %373 = vmatprep.subr.mxu0 %v102
    %374 = vmatpush1.msra.mxu0 %v101
    %375 = vmatprep.subr.mxu0 %v104
    %376 = vmatpush1.msra.mxu0 %v103
    %377 = vmatprep.subr.mxu0 %v106
    %378 = vmatpush1.msra.mxu0 %v105
    %379 = vmatprep.subr.mxu0 %v108
    %380 = vmatpush1.msra.mxu0 %v107
    %381 = vmatprep.subr.mxu0 %v110
    %382 = vmatpush1.msra.mxu0 %v109
    %383 = vmatprep.subr.mxu0 %v112
    %384 = vmatpush1.msra.mxu0 %v111
    %385 = vmatprep.subr.mxu0 %v114
    %386 = vmatpush1.msra.mxu0 %v113
    %387 = vmatprep.subr.mxu0 %v116
    %388 = vmatpush1.msra.mxu0 %v115
    %389 = vmatprep.subr.mxu0 %v118
    %390 = vmatpush1.msra.mxu0 %v117
    %391 = vmatprep.subr.mxu0 %v120
    %392 = vmatpush1.msra.mxu0 %v119
    %393 = vmatprep.subr.mxu0 %v122
    %394 = vmatpush1.msra.mxu0 %v121
    %395 = vmatprep.subr.mxu0 %v124
    %396 = vmatpush1.msra.mxu0 %v123
    %397 = vmatprep.subr.mxu0 %v126
    %398 = vmatpush1.msra.mxu0 %v125
    %399 = vmatprep.subr.mxu0 %v128
    %400 = vmatpush1.msra.mxu0 %v127
    %401 = vmatprep.subr.mxu0 %v130
    %402 = vmatpush1.msra.mxu0 %v129
    %403 = vmatprep.subr.mxu0 %v132
    %404 = vmatpush1.msra.mxu0 %v131
    %405 = vmatprep.subr.mxu0 %v134
    %406 = vmatpush1.msra.mxu0 %v133
    %407 = vmatprep.subr.mxu0 %v136
    %408 = vmatpush1.msra.mxu0 %v135
    %409 = vmatprep.subr.mxu0 %v138
    %410 = vmatpush1.msra.mxu0 %v137
    %411 = vmatprep.subr.mxu0 %v140
    %412 = vmatpush1.msra.mxu0 %v139
    %413 = vmatprep.subr.mxu0 %v142
    %414 = vmatpush1.msra.mxu0 %v141
    %415 = vmatprep.subr.mxu0 %v144
    %416 = vmatpush1.msra.mxu0 %v143
    %417 = vmatprep.mubr.f32.mxu0 %v342
    %418 = vmatmul.mubr.f32.gmra.mrb[0].mxu0 %v341
    %v419 = vpop.f32.mrb[0].mxu0
    %v420 = vadd.f32 %v162, %v419
    %v421 = vpop.f32.mrb[0].mxu0
    %v422 = vadd.f32 %v166, %v421
    %423 = vmatprep.mubr.f32.mxu0 %v345
    %424 = vmatmul.mubr.f32.gmra.mrb[0].mxu0 %v344
    %v425 = vpop.f32.mrb[0].mxu0
    %v426 = vadd.f32 %v162, %v425
    %v427 = vpop.f32.mrb[0].mxu0
    %v428 = vadd.f32 %v166, %v427
    %429 = vdwg.mxu0
    %430 = vmatprep.subr.mxu0 %v146
    %431 = vmatpush1.msra.mxu0 %v145
    %432 = vmatprep.subr.mxu0 %v148
    %433 = vmatpush1.msra.mxu0 %v147
    %434 = vmatprep.subr.mxu0 %v150
    %435 = vmatpush1.msra.mxu0 %v149
    %436 = vmatprep.subr.mxu0 %v152
    %437 = vmatpush1.msra.mxu0 %v151
    %438 = vmatprep.subr.mxu0 %v154
    %439 = vmatpush1.msra.mxu0 %v153
    %440 = vmatprep.subr.mxu0 %v181
    %441 = vmatpush1.msra.mxu0 %v178
    %442 = vmatprep.subr.mxu0 0.0
    %443 = vmatpush1.msra.mxu0 0.0
    %444 = vmatprep.subr.mxu0 0.0
    %445 = vmatpush1.msra.mxu0 0.0
    %446 = vmatprep.subr.mxu0 0.0
    %447 = vmatpush1.msra.mxu0 0.0
    %448 = vmatprep.subr.mxu0 0.0
    %449 = vmatpush1.msra.mxu0 0.0
    %450 = vmatprep.subr.mxu0 0.0
    %451 = vmatpush1.msra.mxu0 0.0
    %452 = vmatprep.subr.mxu0 0.0
    %453 = vmatpush1.msra.mxu0 0.0
    %454 = vmatprep.subr.mxu0 0.0
    %455 = vmatpush1.msra.mxu0 0.0
    %456 = vmatprep.subr.mxu0 0.0
    %457 = vmatpush1.msra.mxu0 0.0
    %458 = vmatprep.subr.mxu0 0.0
    %459 = vmatpush1.msra.mxu0 0.0
    %460 = vmatprep.subr.mxu0 0.0
    %461 = vmatpush1.msra.mxu0 0.0
    %462 = vmatprep.subr.mxu0 0.0
    %463 = vmatpush1.msra.mxu0 0.0
    %464 = vmatprep.subr.mxu0 0.0
    %465 = vmatpush1.msra.mxu0 0.0
    %466 = vmatprep.subr.mxu0 0.0
    %467 = vmatpush1.msra.mxu0 0.0
    %468 = vmatprep.subr.mxu0 0.0
    %469 = vmatpush1.msra.mxu0 0.0
    %470 = vmatprep.subr.mxu0 0.0
    %471 = vmatpush1.msra.mxu0 0.0
    %472 = vmatprep.subr.mxu0 0.0
    %473 = vmatpush1.msra.mxu0 0.0
    %474 = vmatprep.subr.mxu0 0.0
    %475 = vmatpush1.msra.mxu0 0.0
    %476 = vmatprep.subr.mxu0 0.0
    %477 = vmatpush1.msra.mxu0 0.0
    %478 = vmatprep.subr.mxu0 0.0
    %479 = vmatpush1.msra.mxu0 0.0
    %480 = vmatprep.subr.mxu0 0.0
    %481 = vmatpush1.msra.mxu0 0.0
    %482 = vmatprep.subr.mxu0 0.0
    %483 = vmatpush1.msra.mxu0 0.0
    %484 = vmatprep.subr.mxu0 0.0
    %485 = vmatpush1.msra.mxu0 0.0
    %486 = vmatprep.subr.mxu0 0.0
    %487 = vmatpush1.msra.mxu0 0.0
    %488 = vmatprep.subr.mxu0 0.0
    %489 = vmatpush1.msra.mxu0 0.0
    %490 = vmatprep.subr.mxu0 0.0
    %491 = vmatpush1.msra.mxu0 0.0
    %492 = vmatprep.subr.mxu0 0.0
    %493 = vmatpush1.msra.mxu0 0.0
    %494 = vmatprep.mubr.f32.mxu0 0.0
    %495 = vmatmul.mubr.f32.gmra.mrb[0].mxu0 %v348
    %v496 = vpop.f32.mrb[0].mxu0
    %v497 = vadd.f32 %v420, %v496
    %v498 = vpop.f32.mrb[0].mxu0
    %v499 = vadd.f32 %v422, %v498
    %500 = vmatprep.mubr.f32.mxu0 0.0
    %501 = vmatmul.mubr.f32.gmra.mrb[0].mxu0 %v351
    %v502 = vpop.f32.mrb[0].mxu0
    %v503 = vadd.f32 %v426, %v502
    %v504 = vpop.f32.mrb[0].mxu0
    %v505 = vadd.f32 %v428, %v504
    %506 = vdwg.mxu0
    %v507 = vmax.f32 %v497, 0.0
    %v508 = vmax.f32 %v499, 0.0
    %v509 = vmax.f32 %v503, 0.0
    %v510 = vmax.f32 %v505, 0.0
    %v511 = vld [vmem:[%s0] sm:$0xff]
    %v512 = vld [vmem:[%s0 + $0x8] sm:$0xff]
    %v513 = vld [vmem:[%s8] sm:$0xff]
    %v514 = vld [vmem:[%s8 + $0x8] sm:$0xff]
    %v515 = vld [vmem:[%s8 + $0x10] sm:$0xff]
    %v516 = vld [vmem:[%s8 + $0x18] sm:$0xff]
    %v517 = vld [vmem:[%s8 + $0x20] sm:$0xff]
    %v518 = vld [vmem:[%s8 + $0x28] sm:$0xff]
    %v519 = vld [vmem:[%s8 + $0x30] sm:$0x3]
    %v520 = vld [vmem:[%s9] sm:$0xff]
    %v521 = vld [vmem:[%s9 + $0x8] sm:$0xff]
    %v522 = vld [vmem:[%s9 + $0x10] sm:$0xff]
    %v523 = vld [vmem:[%s9 + $0x18] sm:$0xff]
    %v524 = vld [vmem:[%s9 + $0x20] sm:$0xff]
    %v525 = vld [vmem:[%s9 + $0x28] sm:$0xff]
    %v526 = vld [vmem:[%s9 + $0x30] sm:$0xff]
    %v527 = vld [vmem:[%s9 + $0x38] sm:$0xff]
    %v528 = vld [vmem:[%s9 + $0x40] sm:$0xff]
    %v529 = vld [vmem:[%s9 + $0x48] sm:$0xff]
    %v530 = vld [vmem:[%s9 + $0x50] sm:$0xff]
    %v531 = vld [vmem:[%s9 + $0x58] sm:$0xff]
    %v532 = vld [vmem:[%s9 + $0x60] sm:$0xff]
    %v533 = vld [vmem:[%s9 + $0x68] sm:$0xff]
    %v534 = vld [vmem:[%s9 + $0x70] sm:$0xff]
    %v535 = vld [vmem:[%s9 + $0x78] sm:$0xff]
    %v536 = vld [vmem:[%s9 + $0x80] sm:$0xff]
    %v537 = vld [vmem:[%s9 + $0x88] sm:$0xff]
    %v538 = vld [vmem:[%s9 + $0x90] sm:$0xff]
    %v539 = vld [vmem:[%s9 + $0x98] sm:$0xff]
    %v540 = vld [vmem:[%s9 + $0xa0] sm:$0xff]
    %vm541 = vcmask 326656
    %v543 = vsel %vm541, %v338, 0
    %v546 = vsel %vm541, %v340, 0
    %548 = vmatprep.subr.mxu0 0.0
    %549 = vmatpush1.msra.mxu0 %v520
    %550 = vmatprep.subr.mxu0 0.0
    %551 = vmatpush1.msra.mxu0 %v521
    %552 = vmatprep.subr.mxu0 0.0
    %553 = vmatpush1.msra.mxu0 %v522
    %554 = vmatprep.subr.mxu0 0.0
    %555 = vmatpush1.msra.mxu0 %v523
    %556 = vmatprep.subr.mxu0 0.0
    %557 = vmatpush1.msra.mxu0 %v524
    %558 = vmatprep.subr.mxu0 0.0
    %559 = vmatpush1.msra.mxu0 %v525
    %560 = vmatprep.subr.mxu0 0.0
    %561 = vmatpush1.msra.mxu0 %v526
    %562 = vmatprep.subr.mxu0 0.0
    %563 = vmatpush1.msra.mxu0 %v527
    %564 = vmatprep.subr.mxu0 0.0
    %565 = vmatpush1.msra.mxu0 %v528
    %566 = vmatprep.subr.mxu0 0.0
    %567 = vmatpush1.msra.mxu0 %v529
    %568 = vmatprep.subr.mxu0 0.0
    %569 = vmatpush1.msra.mxu0 %v530
    %570 = vmatprep.subr.mxu0 0.0
    %571 = vmatpush1.msra.mxu0 %v531
    %572 = vmatprep.subr.mxu0 0.0
    %573 = vmatpush1.msra.mxu0 %v532
    %574 = vmatprep.subr.mxu0 0.0
    %575 = vmatpush1.msra.mxu0 %v533
    %576 = vmatprep.subr.mxu0 0.0
    %577 = vmatpush1.msra.mxu0 %v534
    %578 = vmatprep.subr.mxu0 0.0
    %579 = vmatpush1.msra.mxu0 %v535
    %580 = vmatprep.subr.mxu0 0.0
    %581 = vmatpush1.msra.mxu0 %v536
    %582 = vmatprep.subr.mxu0 0.0
    %583 = vmatpush1.msra.mxu0 %v537
    %584 = vmatprep.subr.mxu0 0.0
    %585 = vmatpush1.msra.mxu0 %v538
    %586 = vmatprep.subr.mxu0 0.0
    %587 = vmatpush1.msra.mxu0 %v539
    %588 = vmatprep.subr.mxu0 0.0
    %589 = vmatpush1.msra.mxu0 %v540
    %590 = vmatprep.subr.mxu0 0.0
    %591 = vmatpush1.msra.mxu0 0.0
    %592 = vmatprep.subr.mxu0 0.0
    %593 = vmatpush1.msra.mxu0 0.0
    %594 = vmatprep.subr.mxu0 0.0
    %595 = vmatpush1.msra.mxu0 0.0
    %596 = vmatprep.subr.mxu0 0.0
    %597 = vmatpush1.msra.mxu0 0.0
    %598 = vmatprep.subr.mxu0 0.0
    %599 = vmatpush1.msra.mxu0 0.0
    %600 = vmatprep.subr.mxu0 0.0
    %601 = vmatpush1.msra.mxu0 0.0
    %602 = vmatprep.subr.mxu0 0.0
    %603 = vmatpush1.msra.mxu0 0.0
    %604 = vmatprep.subr.mxu0 0.0
    %605 = vmatpush1.msra.mxu0 0.0
    %606 = vmatprep.subr.mxu0 0.0
    %607 = vmatpush1.msra.mxu0 0.0
    %608 = vmatprep.subr.mxu0 0.0
    %609 = vmatpush1.msra.mxu0 0.0
    %610 = vmatprep.subr.mxu0 0.0
    %611 = vmatpush1.msra.mxu0 0.0
    %612 = vmatprep.mubr.f32.mxu0 %v543
    %613 = vmatmul.mubr.f32.gmra.mrb[0].mxu0 %v337
    %v614 = vpop.f32.mrb[0].mxu0
    %v615 = vadd.f32 0.0, %v614
    %v616 = vpop.f32.mrb[0].mxu0
    %617 = vmatprep.mubr.f32.mxu0 %v546
    %618 = vmatmul.mubr.f32.gmra.mrb[0].mxu0 %v339
    %v619 = vpop.f32.mrb[0].mxu0
    %v620 = vadd.f32 0.0, %v619
    %v621 = vpop.f32.mrb[0].mxu0
    %622 = vdwg.mxu0
    %vm623 = vcmask 408576
    %v625 = vsel %vm623, %v511, 0
    %v628 = vsel %vm623, %v512, 0
    %vm630 = vcmask 1041408
    %v632 = vsel %vm630, %v519, 0
    %634 = vmatprep.subr.mxu0 0.0
    %635 = vmatpush1.msra.mxu0 %v513
    %636 = vmatprep.subr.mxu0 0.0
    %637 = vmatpush1.msra.mxu0 %v514
    %638 = vmatprep.subr.mxu0 0.0
    %639 = vmatpush1.msra.mxu0 %v515
    %640 = vmatprep.subr.mxu0 0.0
    %641 = vmatpush1.msra.mxu0 %v516
    %642 = vmatprep.subr.mxu0 0.0
    %643 = vmatpush1.msra.mxu0 %v517
    %644 = vmatprep.subr.mxu0 0.0
    %645 = vmatpush1.msra.mxu0 %v518
    %646 = vmatprep.subr.mxu0 0.0
    %647 = vmatpush1.msra.mxu0 %v632
    %648 = vmatprep.subr.mxu0 0.0
    %649 = vmatpush1.msra.mxu0 0.0
    %650 = vmatprep.subr.mxu0 0.0
    %651 = vmatpush1.msra.mxu0 0.0
    %652 = vmatprep.subr.mxu0 0.0
    %653 = vmatpush1.msra.mxu0 0.0
    %654 = vmatprep.subr.mxu0 0.0
    %655 = vmatpush1.msra.mxu0 0.0
    %656 = vmatprep.subr.mxu0 0.0
    %657 = vmatpush1.msra.mxu0 0.0
    %658 = vmatprep.subr.mxu0 0.0
    %659 = vmatpush1.msra.mxu0 0.0
    %660 = vmatprep.subr.mxu0 0.0
    %661 = vmatpush1.msra.mxu0 0.0
    %662 = vmatprep.subr.mxu0 0.0
    %663 = vmatpush1.msra.mxu0 0.0
    %664 = vmatprep.subr.mxu0 0.0
    %665 = vmatpush1.msra.mxu0 0.0
    %666 = vmatprep.subr.mxu0 0.0
    %667 = vmatpush1.msra.mxu0 0.0
    %668 = vmatprep.subr.mxu0 0.0
    %669 = vmatpush1.msra.mxu0 0.0
    %670 = vmatprep.subr.mxu0 0.0
    %671 = vmatpush1.msra.mxu0 0.0
    %672 = vmatprep.subr.mxu0 0.0
    %673 = vmatpush1.msra.mxu0 0.0
    %674 = vmatprep.subr.mxu0 0.0
    %675 = vmatpush1.msra.mxu0 0.0
    %676 = vmatprep.subr.mxu0 0.0
    %677 = vmatpush1.msra.mxu0 0.0
    %678 = vmatprep.subr.mxu0 0.0
    %679 = vmatpush1.msra.mxu0 0.0
    %680 = vmatprep.subr.mxu0 0.0
    %681 = vmatpush1.msra.mxu0 0.0
    %682 = vmatprep.subr.mxu0 0.0
    %683 = vmatpush1.msra.mxu0 0.0
    %684 = vmatprep.subr.mxu0 0.0
    %685 = vmatpush1.msra.mxu0 0.0
    %686 = vmatprep.subr.mxu0 0.0
    %687 = vmatpush1.msra.mxu0 0.0
    %688 = vmatprep.subr.mxu0 0.0
    %689 = vmatpush1.msra.mxu0 0.0
    %690 = vmatprep.subr.mxu0 0.0
    %691 = vmatpush1.msra.mxu0 0.0
    %692 = vmatprep.subr.mxu0 0.0
    %693 = vmatpush1.msra.mxu0 0.0
    %694 = vmatprep.subr.mxu0 0.0
    %695 = vmatpush1.msra.mxu0 0.0
    %696 = vmatprep.subr.mxu0 0.0
    %697 = vmatpush1.msra.mxu0 0.0
    %698 = vmatprep.mubr.f32.mxu0 0.0
    %699 = vmatmul.mubr.f32.gmra.mrb[0].mxu0 %v625
    %v700 = vpop.f32.mrb[0].mxu0
    %v701 = vadd.f32 %v615, %v700
    %v702 = vpop.f32.mrb[0].mxu0
    %703 = vmatprep.mubr.f32.mxu0 0.0
    %704 = vmatmul.mubr.f32.gmra.mrb[0].mxu0 %v628
    %v705 = vpop.f32.mrb[0].mxu0
    %v706 = vadd.f32 %v620, %v705
    %v707 = vpop.f32.mrb[0].mxu0
    %708 = vdwg.mxu0
    %v709 = vld [vmem:[%s10] sm:$0x1]
    %v711 = vlaneseq
    %v712 = vshrl.u32 %v711, 7
    %v713 = vsub.s32 0, %v712
    %v714 = vrot.slane %v709, %v713
    %v716 = vadd.f32 %v701, %v714
    %v717 = vadd.f32 %v706, %v714
    %v718 = vld [vmem:[%s2] sm:$0xf]
    %v719 = vld [vmem:[%s2 + $0x4] sm:$0xf]
    %v720 = vunpack.c.l.bf16 %v718
    %v721 = vunpack.c.l.bf16 %v719
    %v722 = vld [vmem:[%s11] sm:$0x1]
    %v724 = vlaneseq
    %v725 = vshrl.u32 %v724, 7
    %v726 = vsub.s32 0, %v725
    %v727 = vrot.slane %v722, %v726
    %vm729 = vcmask 130048
    %v731 = vsel %vm729, %v720, 0
    %v734 = vsel %vm729, %v721, 0
    %736 = vmatprep.subr.mxu0 0.0
    %737 = vmatpush1.msra.mxu0 %v716
    %738 = vmatprep.subr.mxu0 0.0
    %739 = vmatpush1.msra.mxu0 %v717
    %740 = vmatprep.subr.mxu0 0.0
    %741 = vmatpush1.msra.mxu0 0.0
    %742 = vmatprep.subr.mxu0 0.0
    %743 = vmatpush1.msra.mxu0 0.0
    %744 = vmatprep.subr.mxu0 0.0
    %745 = vmatpush1.msra.mxu0 0.0
    %746 = vmatprep.subr.mxu0 0.0
    %747 = vmatpush1.msra.mxu0 0.0
    %748 = vmatprep.subr.mxu0 0.0
    %749 = vmatpush1.msra.mxu0 0.0
    %750 = vmatprep.subr.mxu0 0.0
    %751 = vmatpush1.msra.mxu0 0.0
    %752 = vmatprep.subr.mxu0 0.0
    %753 = vmatpush1.msra.mxu0 0.0
    %754 = vmatprep.subr.mxu0 0.0
    %755 = vmatpush1.msra.mxu0 0.0
    %756 = vmatprep.subr.mxu0 0.0
    %757 = vmatpush1.msra.mxu0 0.0
    %758 = vmatprep.subr.mxu0 0.0
    %759 = vmatpush1.msra.mxu0 0.0
    %760 = vmatprep.subr.mxu0 0.0
    %761 = vmatpush1.msra.mxu0 0.0
    %762 = vmatprep.subr.mxu0 0.0
    %763 = vmatpush1.msra.mxu0 0.0
    %764 = vmatprep.subr.mxu0 0.0
    %765 = vmatpush1.msra.mxu0 0.0
    %766 = vmatprep.subr.mxu0 0.0
    %767 = vmatpush1.msra.mxu0 0.0
    %768 = vmatprep.subr.mxu0 0.0
    %769 = vmatpush1.msra.mxu0 0.0
    %770 = vmatprep.subr.mxu0 0.0
    %771 = vmatpush1.msra.mxu0 0.0
    %772 = vmatprep.subr.mxu0 0.0
    %773 = vmatpush1.msra.mxu0 0.0
    %774 = vmatprep.subr.mxu0 0.0
    %775 = vmatpush1.msra.mxu0 0.0
    %776 = vmatprep.subr.mxu0 0.0
    %777 = vmatpush1.msra.mxu0 0.0
    %778 = vmatprep.subr.mxu0 0.0
    %779 = vmatpush1.msra.mxu0 0.0
    %780 = vmatprep.subr.mxu0 0.0
    %781 = vmatpush1.msra.mxu0 0.0
    %782 = vmatprep.subr.mxu0 0.0
    %783 = vmatpush1.msra.mxu0 0.0
    %784 = vmatprep.subr.mxu0 0.0
    %785 = vmatpush1.msra.mxu0 0.0
    %786 = vmatprep.subr.mxu0 0.0
    %787 = vmatpush1.msra.mxu0 0.0
    %788 = vmatprep.subr.mxu0 0.0
    %789 = vmatpush1.msra.mxu0 0.0
    %790 = vmatprep.subr.mxu0 0.0
    %791 = vmatpush1.msra.mxu0 0.0
    %792 = vmatprep.subr.mxu0 0.0
    %793 = vmatpush1.msra.mxu0 0.0
    %794 = vmatprep.subr.mxu0 0.0
    %795 = vmatpush1.msra.mxu0 0.0
    %796 = vmatprep.subr.mxu0 0.0
    %797 = vmatpush1.msra.mxu0 0.0
    %798 = vmatprep.subr.mxu0 0.0
    %799 = vmatpush1.msra.mxu0 0.0
    %800 = vmatprep.mubr.f32.mxu0 0.0
    %801 = vmatmul.mubr.f32.gmra.mrb[0].mxu0 %v731
    %v802 = vpop.f32.mrb[0].mxu0
    %v803 = vadd.f32 %v727, %v802
    %v804 = vpop.f32.mrb[0].mxu0
    %805 = vmatprep.mubr.f32.mxu0 0.0
    %806 = vmatmul.mubr.f32.gmra.mrb[0].mxu0 %v734
    %v807 = vpop.f32.mrb[0].mxu0
    %v808 = vadd.f32 %v727, %v807
    %v809 = vpop.f32.mrb[0].mxu0
    %810 = vdwg.mxu0
    %v811 = vmax.f32 %v803, 0.0
    %v812 = vmax.f32 %v808, 0.0
    %v813 = vld [vmem:[%s12] sm:$0xff]
    %v814 = vld [vmem:[%s12 + $0x8] sm:$0xff]
    %v815 = vld [vmem:[%s12 + $0x10] sm:$0xff]
    %v816 = vld [vmem:[%s12 + $0x18] sm:$0xff]
    %v817 = vld [vmem:[%s12 + $0x20] sm:$0xff]
    %v818 = vld [vmem:[%s12 + $0x28] sm:$0xff]
    %v819 = vld [vmem:[%s12 + $0x30] sm:$0xff]
    %v820 = vld [vmem:[%s12 + $0x38] sm:$0xf]
    %vm821 = vcmask 490496
    %v823 = vsel %vm821, %v811, 0
    %v826 = vsel %vm821, %v812, 0
    %v829 = vsel %vm176, %v820, 0
    %831 = vmatprep.subr.mxu0 0.0
    %832 = vmatpush1.msra.mxu0 %v813
    %833 = vmatprep.subr.mxu0 0.0
    %834 = vmatpush1.msra.mxu0 %v814
    %835 = vmatprep.subr.mxu0 0.0
    %836 = vmatpush1.msra.mxu0 %v815
    %837 = vmatprep.subr.mxu0 0.0
    %838 = vmatpush1.msra.mxu0 %v816
    %839 = vmatprep.subr.mxu0 0.0
    %840 = vmatpush1.msra.mxu0 %v817
    %841 = vmatprep.subr.mxu0 0.0
    %842 = vmatpush1.msra.mxu0 %v818
    %843 = vmatprep.subr.mxu0 0.0
    %844 = vmatpush1.msra.mxu0 %v819
    %845 = vmatprep.subr.mxu0 0.0
    %846 = vmatpush1.msra.mxu0 %v829
    %847 = vmatprep.subr.mxu0 0.0
    %848 = vmatpush1.msra.mxu0 0.0
    %849 = vmatprep.subr.mxu0 0.0
    %850 = vmatpush1.msra.mxu0 0.0
    %851 = vmatprep.subr.mxu0 0.0
    %852 = vmatpush1.msra.mxu0 0.0
    %853 = vmatprep.subr.mxu0 0.0
    %854 = vmatpush1.msra.mxu0 0.0
    %855 = vmatprep.subr.mxu0 0.0
    %856 = vmatpush1.msra.mxu0 0.0
    %857 = vmatprep.subr.mxu0 0.0
    %858 = vmatpush1.msra.mxu0 0.0
    %859 = vmatprep.subr.mxu0 0.0
    %860 = vmatpush1.msra.mxu0 0.0
    %861 = vmatprep.subr.mxu0 0.0
    %862 = vmatpush1.msra.mxu0 0.0
    %863 = vmatprep.subr.mxu0 0.0
    %864 = vmatpush1.msra.mxu0 0.0
    %865 = vmatprep.subr.mxu0 0.0
    %866 = vmatpush1.msra.mxu0 0.0
    %867 = vmatprep.subr.mxu0 0.0
    %868 = vmatpush1.msra.mxu0 0.0
    %869 = vmatprep.subr.mxu0 0.0
    %870 = vmatpush1.msra.mxu0 0.0
    %871 = vmatprep.subr.mxu0 0.0
    %872 = vmatpush1.msra.mxu0 0.0
    %873 = vmatprep.subr.mxu0 0.0
    %874 = vmatpush1.msra.mxu0 0.0
    %875 = vmatprep.subr.mxu0 0.0
    %876 = vmatpush1.msra.mxu0 0.0
    %877 = vmatprep.subr.mxu0 0.0
    %878 = vmatpush1.msra.mxu0 0.0
    %879 = vmatprep.subr.mxu0 0.0
    %880 = vmatpush1.msra.mxu0 0.0
    %881 = vmatprep.subr.mxu0 0.0
    %882 = vmatpush1.msra.mxu0 0.0
    %883 = vmatprep.subr.mxu0 0.0
    %884 = vmatpush1.msra.mxu0 0.0
    %885 = vmatprep.subr.mxu0 0.0
    %886 = vmatpush1.msra.mxu0 0.0
    %887 = vmatprep.subr.mxu0 0.0
    %888 = vmatpush1.msra.mxu0 0.0
    %889 = vmatprep.subr.mxu0 0.0
    %890 = vmatpush1.msra.mxu0 0.0
    %891 = vmatprep.subr.mxu0 0.0
    %892 = vmatpush1.msra.mxu0 0.0
    %893 = vmatprep.subr.mxu0 0.0
    %894 = vmatpush1.msra.mxu0 0.0
    %895 = vmatprep.mubr.f32.mxu0 0.0
    %896 = vmatmul.mubr.f32.gmra.mrb[0].mxu0 %v823
    %v897 = vpop.f32.mrb[0].mxu0
    %v898 = vadd.f32 0.0, %v897
    %v899 = vpop.f32.mrb[0].mxu0
    %900 = vmatprep.mubr.f32.mxu0 0.0
    %901 = vmatmul.mubr.f32.gmra.mrb[0].mxu0 %v826
    %v902 = vpop.f32.mrb[0].mxu0
    %v903 = vadd.f32 0.0, %v902
    %v904 = vpop.f32.mrb[0].mxu0
    %905 = vdwg.mxu0
    %v906 = vld [vmem:[%s13] sm:$0x1]
    %v908 = vlaneseq
    %v909 = vshrl.u32 %v908, 7
    %v910 = vsub.s32 0, %v909
    %v911 = vrot.slane %v906, %v910
    %913 = vmatprep.subr.mxu0 0.0
    %914 = vmatpush1.msra.mxu0 %v898
    %915 = vmatprep.subr.mxu0 0.0
    %916 = vmatpush1.msra.mxu0 %v903
    %917 = vmatprep.subr.mxu0 0.0
    %918 = vmatpush1.msra.mxu0 0.0
    %919 = vmatprep.subr.mxu0 0.0
    %920 = vmatpush1.msra.mxu0 0.0
    %921 = vmatprep.subr.mxu0 0.0
    %922 = vmatpush1.msra.mxu0 0.0
    %923 = vmatprep.subr.mxu0 0.0
    %924 = vmatpush1.msra.mxu0 0.0
    %925 = vmatprep.subr.mxu0 0.0
    %926 = vmatpush1.msra.mxu0 0.0
    %927 = vmatprep.subr.mxu0 0.0
    %928 = vmatpush1.msra.mxu0 0.0
    %929 = vmatprep.subr.mxu0 0.0
    %930 = vmatpush1.msra.mxu0 0.0
    %931 = vmatprep.subr.mxu0 0.0
    %932 = vmatpush1.msra.mxu0 0.0
    %933 = vmatprep.subr.mxu0 0.0
    %934 = vmatpush1.msra.mxu0 0.0
    %935 = vmatprep.subr.mxu0 0.0
    %936 = vmatpush1.msra.mxu0 0.0
    %937 = vmatprep.subr.mxu0 0.0
    %938 = vmatpush1.msra.mxu0 0.0
    %939 = vmatprep.subr.mxu0 0.0
    %940 = vmatpush1.msra.mxu0 0.0
    %941 = vmatprep.subr.mxu0 0.0
    %942 = vmatpush1.msra.mxu0 0.0
    %943 = vmatprep.subr.mxu0 0.0
    %944 = vmatpush1.msra.mxu0 0.0
    %945 = vmatprep.subr.mxu0 0.0
    %946 = vmatpush1.msra.mxu0 0.0
    %947 = vmatprep.subr.mxu0 0.0
    %948 = vmatpush1.msra.mxu0 0.0
    %949 = vmatprep.subr.mxu0 0.0
    %950 = vmatpush1.msra.mxu0 0.0
    %951 = vmatprep.subr.mxu0 0.0
    %952 = vmatpush1.msra.mxu0 0.0
    %953 = vmatprep.subr.mxu0 0.0
    %954 = vmatpush1.msra.mxu0 0.0
    %955 = vmatprep.subr.mxu0 0.0
    %956 = vmatpush1.msra.mxu0 0.0
    %957 = vmatprep.subr.mxu0 0.0
    %958 = vmatpush1.msra.mxu0 0.0
    %959 = vmatprep.subr.mxu0 0.0
    %960 = vmatpush1.msra.mxu0 0.0
    %961 = vmatprep.subr.mxu0 0.0
    %962 = vmatpush1.msra.mxu0 0.0
    %963 = vmatprep.subr.mxu0 0.0
    %964 = vmatpush1.msra.mxu0 0.0
    %965 = vmatprep.subr.mxu0 0.0
    %966 = vmatpush1.msra.mxu0 0.0
    %967 = vmatprep.subr.mxu0 0.0
    %968 = vmatpush1.msra.mxu0 0.0
    %969 = vmatprep.subr.mxu0 0.0
    %970 = vmatpush1.msra.mxu0 0.0
    %971 = vmatprep.subr.mxu0 0.0
    %972 = vmatpush1.msra.mxu0 0.0
    %973 = vmatprep.subr.mxu0 0.0
    %974 = vmatpush1.msra.mxu0 0.0
    %975 = vmatprep.subr.mxu0 0.0
    %976 = vmatpush1.msra.mxu0 0.0
    %977 = vmatprep.mubr.f32.mxu0 0.0
    %978 = vmatmul.mubr.f32.gmra.mrb[0].mxu0 %v731
    %v979 = vpop.f32.mrb[0].mxu0
    %v980 = vadd.f32 %v911, %v979
    %v981 = vpop.f32.mrb[0].mxu0
    %982 = vmatprep.mubr.f32.mxu0 0.0
    %983 = vmatmul.mubr.f32.gmra.mrb[0].mxu0 %v734
    %v984 = vpop.f32.mrb[0].mxu0
    %v985 = vadd.f32 %v911, %v984
    %v986 = vpop.f32.mrb[0].mxu0
    %987 = vdwg.mxu0
    %v988 = vmax.f32 %v980, 0.0
    %v989 = vmax.f32 %v985, 0.0
    %v990 = vld [vmem:[%s14] sm:$0xff]
    %v991 = vld [vmem:[%s14 + $0x8] sm:$0xff]
    %v992 = vld [vmem:[%s14 + $0x10] sm:$0xff]
    %v993 = vld [vmem:[%s14 + $0x18] sm:$0x3f]
    %v994 = vld [vmem:[%s15] sm:$0x1]
    %v996 = vlaneseq
    %v997 = vshrl.u32 %v996, 7
    %v998 = vsub.s32 0, %v997
    %v999 = vrot.slane %v994, %v998
    %vm1001 = vcmask 244736
    %v1003 = vsel %vm1001, %v988, 0
    %v1006 = vsel %vm1001, %v989, 0
    %vm1008 = vcmask 1045504
    %v1010 = vsel %vm1008, %v993, 0
    %1012 = vmatprep.subr.mxu0 0.0
    %1013 = vmatpush1.msra.mxu0 %v990
    %1014 = vmatprep.subr.mxu0 0.0
    %1015 = vmatpush1.msra.mxu0 %v991
    %1016 = vmatprep.subr.mxu0 0.0
    %1017 = vmatpush1.msra.mxu0 %v992
    %1018 = vmatprep.subr.mxu0 0.0
    %1019 = vmatpush1.msra.mxu0 %v1010
    %1020 = vmatprep.subr.mxu0 0.0
    %1021 = vmatpush1.msra.mxu0 0.0
    %1022 = vmatprep.subr.mxu0 0.0
    %1023 = vmatpush1.msra.mxu0 0.0
    %1024 = vmatprep.subr.mxu0 0.0
    %1025 = vmatpush1.msra.mxu0 0.0
    %1026 = vmatprep.subr.mxu0 0.0
    %1027 = vmatpush1.msra.mxu0 0.0
    %1028 = vmatprep.subr.mxu0 0.0
    %1029 = vmatpush1.msra.mxu0 0.0
    %1030 = vmatprep.subr.mxu0 0.0
    %1031 = vmatpush1.msra.mxu0 0.0
    %1032 = vmatprep.subr.mxu0 0.0
    %1033 = vmatpush1.msra.mxu0 0.0
    %1034 = vmatprep.subr.mxu0 0.0
    %1035 = vmatpush1.msra.mxu0 0.0
    %1036 = vmatprep.subr.mxu0 0.0
    %1037 = vmatpush1.msra.mxu0 0.0
    %1038 = vmatprep.subr.mxu0 0.0
    %1039 = vmatpush1.msra.mxu0 0.0
    %1040 = vmatprep.subr.mxu0 0.0
    %1041 = vmatpush1.msra.mxu0 0.0
    %1042 = vmatprep.subr.mxu0 0.0
    %1043 = vmatpush1.msra.mxu0 0.0
    %1044 = vmatprep.subr.mxu0 0.0
    %1045 = vmatpush1.msra.mxu0 0.0
    %1046 = vmatprep.subr.mxu0 0.0
    %1047 = vmatpush1.msra.mxu0 0.0
    %1048 = vmatprep.subr.mxu0 0.0
    %1049 = vmatpush1.msra.mxu0 0.0
    %1050 = vmatprep.subr.mxu0 0.0
    %1051 = vmatpush1.msra.mxu0 0.0
    %1052 = vmatprep.subr.mxu0 0.0
    %1053 = vmatpush1.msra.mxu0 0.0
    %1054 = vmatprep.subr.mxu0 0.0
    %1055 = vmatpush1.msra.mxu0 0.0
    %1056 = vmatprep.subr.mxu0 0.0
    %1057 = vmatpush1.msra.mxu0 0.0
    %1058 = vmatprep.subr.mxu0 0.0
    %1059 = vmatpush1.msra.mxu0 0.0
    %1060 = vmatprep.subr.mxu0 0.0
    %1061 = vmatpush1.msra.mxu0 0.0
    %1062 = vmatprep.subr.mxu0 0.0
    %1063 = vmatpush1.msra.mxu0 0.0
    %1064 = vmatprep.subr.mxu0 0.0
    %1065 = vmatpush1.msra.mxu0 0.0
    %1066 = vmatprep.subr.mxu0 0.0
    %1067 = vmatpush1.msra.mxu0 0.0
    %1068 = vmatprep.subr.mxu0 0.0
    %1069 = vmatpush1.msra.mxu0 0.0
    %1070 = vmatprep.subr.mxu0 0.0
    %1071 = vmatpush1.msra.mxu0 0.0
    %1072 = vmatprep.subr.mxu0 0.0
    %1073 = vmatpush1.msra.mxu0 0.0
    %1074 = vmatprep.subr.mxu0 0.0
    %1075 = vmatpush1.msra.mxu0 0.0
    %1076 = vmatprep.mubr.f32.mxu0 0.0
    %1077 = vmatmul.mubr.f32.gmra.mrb[0].mxu0 %v1003
    %v1078 = vpop.f32.mrb[0].mxu0
    %v1079 = vadd.f32 %v999, %v1078
    %v1080 = vpop.f32.mrb[0].mxu0
    %1081 = vmatprep.mubr.f32.mxu0 0.0
    %1082 = vmatmul.mubr.f32.gmra.mrb[0].mxu0 %v1006
    %v1083 = vpop.f32.mrb[0].mxu0
    %v1084 = vadd.f32 %v999, %v1083
    %v1085 = vpop.f32.mrb[0].mxu0
    %1086 = vdwg.mxu0
    %1087 = vst [vmem:[#allocation4] sm:$0xff] %v1079
    %1088 = vst [vmem:[#allocation4 + $0x8] sm:$0xff] %v1084
    %v1089 = vld [vmem:[%s3] sm:$0xff]
    %v1090 = vld [vmem:[%s3 + $0x8] sm:$0xff]
    %v1091 = vld [vmem:[%s16] sm:$0xff]
    %v1092 = vld [vmem:[%s16 + $0x8] sm:$0xff]
    %v1093 = vld [vmem:[%s16 + $0x10] sm:$0xff]
    %v1094 = vld [vmem:[%s16 + $0x18] sm:$0xff]
    %v1095 = vld [vmem:[%s16 + $0x20] sm:$0xff]
    %v1096 = vld [vmem:[%s16 + $0x28] sm:$0xff]
    %v1097 = vld [vmem:[%s16 + $0x30] sm:$0x3]
    %v1098 = vld [vmem:[%s17] sm:$0xff]
    %v1099 = vld [vmem:[%s17 + $0x8] sm:$0xff]
    %v1100 = vld [vmem:[%s17 + $0x10] sm:$0xff]
    %v1101 = vld [vmem:[%s17 + $0x18] sm:$0xff]
    %v1102 = vld [vmem:[%s17 + $0x20] sm:$0xff]
    %v1103 = vld [vmem:[%s17 + $0x28] sm:$0xff]
    %v1104 = vld [vmem:[%s17 + $0x30] sm:$0xff]
    %v1105 = vld [vmem:[%s17 + $0x38] sm:$0xff]
    %v1106 = vld [vmem:[%s17 + $0x40] sm:$0xff]
    %v1107 = vld [vmem:[%s17 + $0x48] sm:$0xff]
    %v1108 = vld [vmem:[%s17 + $0x50] sm:$0xff]
    %v1109 = vld [vmem:[%s17 + $0x58] sm:$0xff]
    %v1110 = vld [vmem:[%s17 + $0x60] sm:$0xff]
    %v1111 = vld [vmem:[%s17 + $0x68] sm:$0xff]
    %v1112 = vld [vmem:[%s17 + $0x70] sm:$0xff]
    %v1113 = vld [vmem:[%s17 + $0x78] sm:$0xff]
    %v1114 = vld [vmem:[%s17 + $0x80] sm:$0xff]
    %v1115 = vld [vmem:[%s17 + $0x88] sm:$0xff]
    %v1116 = vld [vmem:[%s17 + $0x90] sm:$0xff]
    %v1117 = vld [vmem:[%s17 + $0x98] sm:$0xff]
    %v1118 = vld [vmem:[%s17 + $0xa0] sm:$0xff]
    %v1120 = vsel %vm541, %v508, 0
    %v1123 = vsel %vm541, %v510, 0
    %1125 = vmatprep.subr.mxu0 0.0
    %1126 = vmatpush1.msra.mxu0 %v1098
    %1127 = vmatprep.subr.mxu0 0.0
    %1128 = vmatpush1.msra.mxu0 %v1099
    %1129 = vmatprep.subr.mxu0 0.0
    %1130 = vmatpush1.msra.mxu0 %v1100
    %1131 = vmatprep.subr.mxu0 0.0
    %1132 = vmatpush1.msra.mxu0 %v1101
    %1133 = vmatprep.subr.mxu0 0.0
    %1134 = vmatpush1.msra.mxu0 %v1102
    %1135 = vmatprep.subr.mxu0 0.0
    %1136 = vmatpush1.msra.mxu0 %v1103
    %1137 = vmatprep.subr.mxu0 0.0
    %1138 = vmatpush1.msra.mxu0 %v1104
    %1139 = vmatprep.subr.mxu0 0.0
    %1140 = vmatpush1.msra.mxu0 %v1105
    %1141 = vmatprep.subr.mxu0 0.0
    %1142 = vmatpush1.msra.mxu0 %v1106
    %1143 = vmatprep.subr.mxu0 0.0
    %1144 = vmatpush1.msra.mxu0 %v1107
    %1145 = vmatprep.subr.mxu0 0.0
    %1146 = vmatpush1.msra.mxu0 %v1108
    %1147 = vmatprep.subr.mxu0 0.0
    %1148 = vmatpush1.msra.mxu0 %v1109
    %1149 = vmatprep.subr.mxu0 0.0
    %1150 = vmatpush1.msra.mxu0 %v1110
    %1151 = vmatprep.subr.mxu0 0.0
    %1152 = vmatpush1.msra.mxu0 %v1111
    %1153 = vmatprep.subr.mxu0 0.0
    %1154 = vmatpush1.msra.mxu0 %v1112
    %1155 = vmatprep.subr.mxu0 0.0
    %1156 = vmatpush1.msra.mxu0 %v1113
    %1157 = vmatprep.subr.mxu0 0.0
    %1158 = vmatpush1.msra.mxu0 %v1114
    %1159 = vmatprep.subr.mxu0 0.0
    %1160 = vmatpush1.msra.mxu0 %v1115
    %1161 = vmatprep.subr.mxu0 0.0
    %1162 = vmatpush1.msra.mxu0 %v1116
    %1163 = vmatprep.subr.mxu0 0.0
    %1164 = vmatpush1.msra.mxu0 %v1117
    %1165 = vmatprep.subr.mxu0 0.0
    %1166 = vmatpush1.msra.mxu0 %v1118
    %1167 = vmatprep.subr.mxu0 0.0
    %1168 = vmatpush1.msra.mxu0 0.0
    %1169 = vmatprep.subr.mxu0 0.0
    %1170 = vmatpush1.msra.mxu0 0.0
    %1171 = vmatprep.subr.mxu0 0.0
    %1172 = vmatpush1.msra.mxu0 0.0
    %1173 = vmatprep.subr.mxu0 0.0
    %1174 = vmatpush1.msra.mxu0 0.0
    %1175 = vmatprep.subr.mxu0 0.0
    %1176 = vmatpush1.msra.mxu0 0.0
    %1177 = vmatprep.subr.mxu0 0.0
    %1178 = vmatpush1.msra.mxu0 0.0
    %1179 = vmatprep.subr.mxu0 0.0
    %1180 = vmatpush1.msra.mxu0 0.0
    %1181 = vmatprep.subr.mxu0 0.0
    %1182 = vmatpush1.msra.mxu0 0.0
    %1183 = vmatprep.subr.mxu0 0.0
    %1184 = vmatpush1.msra.mxu0 0.0
    %1185 = vmatprep.subr.mxu0 0.0
    %1186 = vmatpush1.msra.mxu0 0.0
    %1187 = vmatprep.subr.mxu0 0.0
    %1188 = vmatpush1.msra.mxu0 0.0
    %1189 = vmatprep.mubr.f32.mxu0 %v1120
    %1190 = vmatmul.mubr.f32.gmra.mrb[0].mxu0 %v507
    %v1191 = vpop.f32.mrb[0].mxu0
    %v1192 = vadd.f32 0.0, %v1191
    %v1193 = vpop.f32.mrb[0].mxu0
    %1194 = vmatprep.mubr.f32.mxu0 %v1123
    %1195 = vmatmul.mubr.f32.gmra.mrb[0].mxu0 %v509
    %v1196 = vpop.f32.mrb[0].mxu0
    %v1197 = vadd.f32 0.0, %v1196
    %v1198 = vpop.f32.mrb[0].mxu0
    %1199 = vdwg.mxu0
    %v1201 = vsel %vm623, %v1089, 0
    %v1204 = vsel %vm623, %v1090, 0
    %v1207 = vsel %vm630, %v1097, 0
    %1209 = vmatprep.subr.mxu0 0.0
    %1210 = vmatpush1.msra.mxu0 %v1091
    %1211 = vmatprep.subr.mxu0 0.0
    %1212 = vmatpush1.msra.mxu0 %v1092
    %1213 = vmatprep.subr.mxu0 0.0
    %1214 = vmatpush1.msra.mxu0 %v1093
    %1215 = vmatprep.subr.mxu0 0.0
    %1216 = vmatpush1.msra.mxu0 %v1094
    %1217 = vmatprep.subr.mxu0 0.0
    %1218 = vmatpush1.msra.mxu0 %v1095
    %1219 = vmatprep.subr.mxu0 0.0
    %1220 = vmatpush1.msra.mxu0 %v1096
    %1221 = vmatprep.subr.mxu0 0.0
    %1222 = vmatpush1.msra.mxu0 %v1207
    %1223 = vmatprep.subr.mxu0 0.0
    %1224 = vmatpush1.msra.mxu0 0.0
    %1225 = vmatprep.subr.mxu0 0.0
    %1226 = vmatpush1.msra.mxu0 0.0
    %1227 = vmatprep.subr.mxu0 0.0
    %1228 = vmatpush1.msra.mxu0 0.0
    %1229 = vmatprep.subr.mxu0 0.0
    %1230 = vmatpush1.msra.mxu0 0.0
    %1231 = vmatprep.subr.mxu0 0.0
    %1232 = vmatpush1.msra.mxu0 0.0
    %1233 = vmatprep.subr.mxu0 0.0
    %1234 = vmatpush1.msra.mxu0 0.0
    %1235 = vmatprep.subr.mxu0 0.0
    %1236 = vmatpush1.msra.mxu0 0.0
    %1237 = vmatprep.subr.mxu0 0.0
    %1238 = vmatpush1.msra.mxu0 0.0
    %1239 = vmatprep.subr.mxu0 0.0
    %1240 = vmatpush1.msra.mxu0 0.0
    %1241 = vmatprep.subr.mxu0 0.0
    %1242 = vmatpush1.msra.mxu0 0.0
    %1243 = vmatprep.subr.mxu0 0.0
    %1244 = vmatpush1.msra.mxu0 0.0
    %1245 = vmatprep.subr.mxu0 0.0
    %1246 = vmatpush1.msra.mxu0 0.0
    %1247 = vmatprep.subr.mxu0 0.0
    %1248 = vmatpush1.msra.mxu0 0.0
    %1249 = vmatprep.subr.mxu0 0.0
    %1250 = vmatpush1.msra.mxu0 0.0
    %1251 = vmatprep.subr.mxu0 0.0
    %1252 = vmatpush1.msra.mxu0 0.0
    %1253 = vmatprep.subr.mxu0 0.0
    %1254 = vmatpush1.msra.mxu0 0.0
    %1255 = vmatprep.subr.mxu0 0.0
    %1256 = vmatpush1.msra.mxu0 0.0
    %1257 = vmatprep.subr.mxu0 0.0
    %1258 = vmatpush1.msra.mxu0 0.0
    %1259 = vmatprep.subr.mxu0 0.0
    %1260 = vmatpush1.msra.mxu0 0.0
    %1261 = vmatprep.subr.mxu0 0.0
    %1262 = vmatpush1.msra.mxu0 0.0
    %1263 = vmatprep.subr.mxu0 0.0
    %1264 = vmatpush1.msra.mxu0 0.0
    %1265 = vmatprep.subr.mxu0 0.0
    %1266 = vmatpush1.msra.mxu0 0.0
    %1267 = vmatprep.subr.mxu0 0.0
    %1268 = vmatpush1.msra.mxu0 0.0
    %1269 = vmatprep.subr.mxu0 0.0
    %1270 = vmatpush1.msra.mxu0 0.0
    %1271 = vmatprep.subr.mxu0 0.0
    %1272 = vmatpush1.msra.mxu0 0.0
    %1273 = vmatprep.mubr.f32.mxu0 0.0
    %1274 = vmatmul.mubr.f32.gmra.mrb[0].mxu0 %v1201
    %v1275 = vpop.f32.mrb[0].mxu0
    %v1276 = vadd.f32 %v1192, %v1275
    %v1277 = vpop.f32.mrb[0].mxu0
    %1278 = vmatprep.mubr.f32.mxu0 0.0
    %1279 = vmatmul.mubr.f32.gmra.mrb[0].mxu0 %v1204
    %v1280 = vpop.f32.mrb[0].mxu0
    %v1281 = vadd.f32 %v1197, %v1280
    %v1282 = vpop.f32.mrb[0].mxu0
    %1283 = vdwg.mxu0
    %v1284 = vld [vmem:[%s5] sm:$0xff]
    %v1285 = vld [vmem:[%s5 + $0x8] sm:$0xff]
    %v1286 = vld [vmem:[%s18] sm:$0xff]
    %v1287 = vld [vmem:[%s18 + $0x8] sm:$0xff]
    %v1288 = vld [vmem:[%s18 + $0x10] sm:$0xff]
    %v1289 = vld [vmem:[%s18 + $0x18] sm:$0x3f]
    %v1291 = vsel %vm1001, %v1284, 0
    %v1294 = vsel %vm1001, %v1285, 0
    %v1297 = vsel %vm1008, %v1289, 0
    %1299 = vmatprep.subr.mxu0 0.0
    %1300 = vmatpush1.msra.mxu0 %v1286
    %1301 = vmatprep.subr.mxu0 0.0
    %1302 = vmatpush1.msra.mxu0 %v1287
    %1303 = vmatprep.subr.mxu0 0.0
    %1304 = vmatpush1.msra.mxu0 %v1288
    %1305 = vmatprep.subr.mxu0 0.0
    %1306 = vmatpush1.msra.mxu0 %v1297
    %1307 = vmatprep.subr.mxu0 0.0
    %1308 = vmatpush1.msra.mxu0 0.0
    %1309 = vmatprep.subr.mxu0 0.0
    %1310 = vmatpush1.msra.mxu0 0.0
    %1311 = vmatprep.subr.mxu0 0.0
    %1312 = vmatpush1.msra.mxu0 0.0
    %1313 = vmatprep.subr.mxu0 0.0
    %1314 = vmatpush1.msra.mxu0 0.0
    %1315 = vmatprep.subr.mxu0 0.0
    %1316 = vmatpush1.msra.mxu0 0.0
    %1317 = vmatprep.subr.mxu0 0.0
    %1318 = vmatpush1.msra.mxu0 0.0
    %1319 = vmatprep.subr.mxu0 0.0
    %1320 = vmatpush1.msra.mxu0 0.0
    %1321 = vmatprep.subr.mxu0 0.0
    %1322 = vmatpush1.msra.mxu0 0.0
    %1323 = vmatprep.subr.mxu0 0.0
    %1324 = vmatpush1.msra.mxu0 0.0
    %1325 = vmatprep.subr.mxu0 0.0
    %1326 = vmatpush1.msra.mxu0 0.0
    %1327 = vmatprep.subr.mxu0 0.0
    %1328 = vmatpush1.msra.mxu0 0.0
    %1329 = vmatprep.subr.mxu0 0.0
    %1330 = vmatpush1.msra.mxu0 0.0
    %1331 = vmatprep.subr.mxu0 0.0
    %1332 = vmatpush1.msra.mxu0 0.0
    %1333 = vmatprep.subr.mxu0 0.0
    %1334 = vmatpush1.msra.mxu0 0.0
    %1335 = vmatprep.subr.mxu0 0.0
    %1336 = vmatpush1.msra.mxu0 0.0
    %1337 = vmatprep.subr.mxu0 0.0
    %1338 = vmatpush1.msra.mxu0 0.0
    %1339 = vmatprep.subr.mxu0 0.0
    %1340 = vmatpush1.msra.mxu0 0.0
    %1341 = vmatprep.subr.mxu0 0.0
    %1342 = vmatpush1.msra.mxu0 0.0
    %1343 = vmatprep.subr.mxu0 0.0
    %1344 = vmatpush1.msra.mxu0 0.0
    %1345 = vmatprep.subr.mxu0 0.0
    %1346 = vmatpush1.msra.mxu0 0.0
    %1347 = vmatprep.subr.mxu0 0.0
    %1348 = vmatpush1.msra.mxu0 0.0
    %1349 = vmatprep.subr.mxu0 0.0
    %1350 = vmatpush1.msra.mxu0 0.0
    %1351 = vmatprep.subr.mxu0 0.0
    %1352 = vmatpush1.msra.mxu0 0.0
    %1353 = vmatprep.subr.mxu0 0.0
    %1354 = vmatpush1.msra.mxu0 0.0
    %1355 = vmatprep.subr.mxu0 0.0
    %1356 = vmatpush1.msra.mxu0 0.0
    %1357 = vmatprep.subr.mxu0 0.0
    %1358 = vmatpush1.msra.mxu0 0.0
    %1359 = vmatprep.subr.mxu0 0.0
    %1360 = vmatpush1.msra.mxu0 0.0
    %1361 = vmatprep.subr.mxu0 0.0
    %1362 = vmatpush1.msra.mxu0 0.0
    %1363 = vmatprep.mubr.f32.mxu0 0.0
    %1364 = vmatmul.mubr.f32.gmra.mrb[0].mxu0 %v1291
    %v1365 = vpop.f32.mrb[0].mxu0
    %v1366 = vadd.f32 0.0, %v1365
    %v1367 = vpop.f32.mrb[0].mxu0
    %1368 = vmatprep.mubr.f32.mxu0 0.0
    %1369 = vmatmul.mubr.f32.gmra.mrb[0].mxu0 %v1294
    %v1370 = vpop.f32.mrb[0].mxu0
    %v1371 = vadd.f32 0.0, %v1370
    %v1372 = vpop.f32.mrb[0].mxu0
    %1373 = vdwg.mxu0
    %v1374 = vadd.f32 %v1276, %v1366
    %v1375 = vadd.f32 %v1281, %v1371
    %v1376 = vld [vmem:[%s19] sm:$0x1]
    %v1378 = vlaneseq
    %v1379 = vshrl.u32 %v1378, 7
    %v1380 = vsub.s32 0, %v1379
    %v1381 = vrot.slane %v1376, %v1380
    %v1383 = vadd.f32 %v1374, %v1381
    %v1384 = vadd.f32 %v1375, %v1381
    %v1385 = vmax.f32 %v1383, 0.0
    %v1386 = vmax.f32 %v1384, 0.0
    %v1387 = vld [vmem:[%s20] sm:$0xff]
    %v1388 = vld [vmem:[%s20 + $0x8] sm:$0xff]
    %v1389 = vld [vmem:[%s20 + $0x10] sm:$0xff]
    %v1390 = vld [vmem:[%s20 + $0x18] sm:$0xff]
    %v1391 = vld [vmem:[%s20 + $0x20] sm:$0xff]
    %v1392 = vld [vmem:[%s20 + $0x28] sm:$0xff]
    %v1393 = vld [vmem:[%s20 + $0x30] sm:$0xff]
    %v1394 = vld [vmem:[%s20 + $0x38] sm:$0xff]
    %v1395 = vld [vmem:[%s20 + $0x40] sm:$0xff]
    %v1396 = vld [vmem:[%s20 + $0x48] sm:$0xff]
    %v1397 = vld [vmem:[%s21] sm:$0x1]
    %v1399 = vlaneseq
    %v1400 = vshrl.u32 %v1399, 7
    %v1401 = vsub.s32 0, %v1400
    %v1402 = vrot.slane %v1397, %v1401
    %vm1404 = vcmask 654336
    %v1406 = vsel %vm1404, %v1385, 0
    %v1409 = vsel %vm1404, %v1386, 0
    %1411 = vmatprep.subr.mxu0 0.0
    %1412 = vmatpush1.msra.mxu0 %v1387
    %1413 = vmatprep.subr.mxu0 0.0
    %1414 = vmatpush1.msra.mxu0 %v1388
    %1415 = vmatprep.subr.mxu0 0.0
    %1416 = vmatpush1.msra.mxu0 %v1389
    %1417 = vmatprep.subr.mxu0 0.0
    %1418 = vmatpush1.msra.mxu0 %v1390
    %1419 = vmatprep.subr.mxu0 0.0
    %1420 = vmatpush1.msra.mxu0 %v1391
    %1421 = vmatprep.subr.mxu0 0.0
    %1422 = vmatpush1.msra.mxu0 %v1392
    %1423 = vmatprep.subr.mxu0 0.0
    %1424 = vmatpush1.msra.mxu0 %v1393
    %1425 = vmatprep.subr.mxu0 0.0
    %1426 = vmatpush1.msra.mxu0 %v1394
    %1427 = vmatprep.subr.mxu0 0.0
    %1428 = vmatpush1.msra.mxu0 %v1395
    %1429 = vmatprep.subr.mxu0 0.0
    %1430 = vmatpush1.msra.mxu0 %v1396
    %1431 = vmatprep.subr.mxu0 0.0
    %1432 = vmatpush1.msra.mxu0 0.0
    %1433 = vmatprep.subr.mxu0 0.0
    %1434 = vmatpush1.msra.mxu0 0.0
    %1435 = vmatprep.subr.mxu0 0.0
    %1436 = vmatpush1.msra.mxu0 0.0
    %1437 = vmatprep.subr.mxu0 0.0
    %1438 = vmatpush1.msra.mxu0 0.0
    %1439 = vmatprep.subr.mxu0 0.0
    %1440 = vmatpush1.msra.mxu0 0.0
    %1441 = vmatprep.subr.mxu0 0.0
    %1442 = vmatpush1.msra.mxu0 0.0
    %1443 = vmatprep.subr.mxu0 0.0
    %1444 = vmatpush1.msra.mxu0 0.0
    %1445 = vmatprep.subr.mxu0 0.0
    %1446 = vmatpush1.msra.mxu0 0.0
    %1447 = vmatprep.subr.mxu0 0.0
    %1448 = vmatpush1.msra.mxu0 0.0
    %1449 = vmatprep.subr.mxu0 0.0
    %1450 = vmatpush1.msra.mxu0 0.0
    %1451 = vmatprep.subr.mxu0 0.0
    %1452 = vmatpush1.msra.mxu0 0.0
    %1453 = vmatprep.subr.mxu0 0.0
    %1454 = vmatpush1.msra.mxu0 0.0
    %1455 = vmatprep.subr.mxu0 0.0
    %1456 = vmatpush1.msra.mxu0 0.0
    %1457 = vmatprep.subr.mxu0 0.0
    %1458 = vmatpush1.msra.mxu0 0.0
    %1459 = vmatprep.subr.mxu0 0.0
    %1460 = vmatpush1.msra.mxu0 0.0
    %1461 = vmatprep.subr.mxu0 0.0
    %1462 = vmatpush1.msra.mxu0 0.0
    %1463 = vmatprep.subr.mxu0 0.0
    %1464 = vmatpush1.msra.mxu0 0.0
    %1465 = vmatprep.subr.mxu0 0.0
    %1466 = vmatpush1.msra.mxu0 0.0
    %1467 = vmatprep.subr.mxu0 0.0
    %1468 = vmatpush1.msra.mxu0 0.0
    %1469 = vmatprep.subr.mxu0 0.0
    %1470 = vmatpush1.msra.mxu0 0.0
    %1471 = vmatprep.subr.mxu0 0.0
    %1472 = vmatpush1.msra.mxu0 0.0
    %1473 = vmatprep.subr.mxu0 0.0
    %1474 = vmatpush1.msra.mxu0 0.0
    %1475 = vmatprep.mubr.f32.mxu0 0.0
    %1476 = vmatmul.mubr.f32.gmra.mrb[0].mxu0 %v1406
    %v1477 = vpop.f32.mrb[0].mxu0
    %v1478 = vadd.f32 %v1402, %v1477
    %v1479 = vpop.f32.mrb[0].mxu0
    %1480 = vmatprep.mubr.f32.mxu0 0.0
    %1481 = vmatmul.mubr.f32.gmra.mrb[0].mxu0 %v1409
    %v1482 = vpop.f32.mrb[0].mxu0
    %v1483 = vadd.f32 %v1402, %v1482
    %v1484 = vpop.f32.mrb[0].mxu0
    %1485 = vdwg.mxu0
    %1486 = vst [vmem:[#allocation2] sm:$0xff] %v1478
    %1487 = vst [vmem:[#allocation2 + $0x8] sm:$0xff] %v1483
    // Predicated region
    $region90: #{tpu_custom_call.1} parent=1 // pred_check
      _
    $region91: #{tpu_custom_call.1} parent=1 // pred_check_branch
      %1489 = sbr.rel (0) target = $region93
    $region92: #{tpu_custom_call.1} parent=1 // pred_region
      %s1491 = ssub.s32 256, 256
      %1492 = vsyncadd [#allocation3], %s1491
      %s1493 = sshll.u32 [#allocation2], 4
      %s1494 = int_to_ptr.vmem [resolvable:$true] %s1493
      %1499 = dma.vmem_to_hbm [thread:$0]  %s1494, 256, %s22, [#allocation3], 128, 128, 8
    $region93: #{tpu_custom_call.1} parent=1 // pred_fallthru
      _
    // Predicated region
    $region94: #{tpu_custom_call.1} parent=1 // pred_check
      _
    $region95: #{tpu_custom_call.1} parent=1 // pred_check_branch
      %1501 = sbr.rel (0) target = $region97
    $region96: #{tpu_custom_call.1} parent=1 // pred_region
      %s1503 = ssub.s32 256, 256
      %1504 = vsyncadd [#allocation5], %s1503
      %s1505 = sshll.u32 [#allocation4], 4
      %s1506 = int_to_ptr.vmem [resolvable:$true] %s1505
      %1511 = dma.vmem_to_hbm [thread:$0]  %s1506, 256, %s23, [#allocation5], 128, 128, 8
    $region97: #{tpu_custom_call.1} parent=1 // pred_fallthru
      _
    // Predicated region
    $region98: #{tpu_custom_call.1} parent=1 // pred_check
      _
    $region99: #{tpu_custom_call.1} parent=1 // pred_check_branch
      %1513 = sbr.rel (0) target = $region101
    $region100: #{tpu_custom_call.1} parent=1 // pred_region
      %1514 = dma.done [#allocation3], 256
    $region101: #{tpu_custom_call.1} parent=1 // pred_fallthru
      _
    // Predicated region
    $region102: #{tpu_custom_call.1} parent=1 // pred_check
      _
    $region103: #{tpu_custom_call.1} parent=1 // pred_check_branch
      %1516 = sbr.rel (0) target = $region105
    $region104: #{tpu_custom_call.1} parent=1 // pred_region
      %1517 = dma.done [#allocation5], 256
    $region105: #{tpu_custom_call.1} parent=1 // pred_fallthru
      _
    %1518 = vsyncpa [#allocation3], 1
    %1519 = vsyncpa [#allocation5], 1

</llo_original>
